<compile_context>
chip_gen: v7x
topology: tpu7x:2x2x1
jax: 0.10.0
libtpu: 0.0.40
codegen_flags: <defaults>
</compile_context>

<pallas_src>
import functools

import jax
import jax.numpy as jnp
from jax.experimental import pallas as pl
from jax.experimental.pallas import tpu as pltpu


# --------------------------------------------------------------------------
# Pallas kernel: tiled matmul, resident weights, f32 accumulation,
# optional fused residual add + ReLU epilogue.
# --------------------------------------------------------------------------
def _conv_kernel(*refs, apply_relu, has_residual, acc_in_out, tk):
    p_ref, w_ref = refs[0], refs[1]
    pos = 2
    r_ref = None
    if has_residual:
        r_ref = refs[pos]
        pos += 1
    o_ref = refs[pos]
    # f32 outputs are k-resident (block index constant along k), so they act
    # as the accumulator directly; bf16 outputs use the f32 scratch.
    acc_ref = o_ref if acc_in_out else refs[pos + 1]

    k = pl.program_id(1)

    @pl.when(k == 0)
    def _():
        acc_ref[...] = jnp.zeros_like(acc_ref)

    # Weights are fully VMEM-resident; slice the k-th contraction chunk.
    k0 = pl.multiple_of(k * tk, tk)
    w_blk = w_ref[pl.ds(k0, tk), :]
    acc_ref[...] += jnp.dot(p_ref[...], w_blk,
                            preferred_element_type=jnp.float32)

    if has_residual or apply_relu or not acc_in_out:
        @pl.when(k == pl.num_programs(1) - 1)
        def _():
            acc = acc_ref[...]
            if has_residual:
                acc = acc + r_ref[...].astype(jnp.float32)  # add in f32
            if apply_relu:
                acc = jnp.maximum(acc, 0.0)
            o_ref[...] = acc.astype(o_ref.dtype)


# --------------------------------------------------------------------------
# Tiling helpers
# --------------------------------------------------------------------------
def _round_up(a, b):
    return ((a + b - 1) // b) * b


def _choose_tm(m):
    # Prefer big row tiles (512 rows ~ 85% of HBM roofline); when M is modest
    # keep >= 2 grid steps of >= 256 rows so dual-TC chips (v7x) can split the
    # "parallel" M axis -- the extra ~0.35 us step is noise on single-TC
    # v5e/v6e.  Never drop below a 256-row tile just to get 2 steps.
    if m >= 1024:
        tm = 512
    elif m >= 512:
        tm = 256
    else:
        tm = _round_up(m, 8)
    return tm, _round_up(m, tm)


def _choose_tk(kp):
    for t in (512, 256, 128):
        if kp % t == 0:
            return t
    return kp  # unreachable: kp is a multiple of 128


# --------------------------------------------------------------------------
# pallas_call wrapper: fused conv-as-matmul (+residual, +ReLU)
# --------------------------------------------------------------------------
def conv_matmul(patches, w_mat, *, residual=None, apply_relu=False,
                out_dtype=jnp.float32):
    M, K = patches.shape
    Kw, Cout = w_mat.shape
    assert Kw == K

    Kp = _round_up(K, 128)        # lane-dense contraction axis
    Cp = _round_up(Cout, 128)     # lane-dense output axis (unmasked stores)
    tm, Mp = _choose_tm(M)
    tk = _choose_tk(Kp)
    acc_in_out = jnp.dtype(out_dtype) == jnp.dtype(jnp.float32)

    # Cast first, pad in bf16 (zero padding is exact for a matmul).
    p = patches.astype(jnp.bfloat16)
    if (Mp, Kp) != (M, K):
        p = jnp.pad(p, ((0, Mp - M), (0, Kp - K)))
    w = w_mat.astype(jnp.bfloat16)
    if (Kp, Cp) != (K, Cout):
        w = jnp.pad(w, ((0, Kp - K), (0, Cp - Cout)))

    inputs = [p, w]
    in_specs = [
        # Patch tiles stream (default double-buffering; bump to
        # pl.Buffered(3) only if xprof shows exposed DMA at small tm).
        pl.BlockSpec((tm, tk), lambda i, k: (i, k)),
        # Grid-invariant index map: the whole packed weight is DMA'd into
        # VMEM once and stays resident for the entire grid.
        pl.BlockSpec((Kp, Cp), lambda i, k: (0, 0)),
    ]
    if residual is not None:
        r = residual.astype(jnp.bfloat16)  # carried in bf16, added in f32
        r = jnp.pad(r, ((0, Mp - M), (0, Cp - Cout)))
        inputs.append(r)
        in_specs.append(pl.BlockSpec((tm, Cp), lambda i, k: (i, 0)))

    kernel = functools.partial(_conv_kernel,
                               apply_relu=apply_relu,
                               has_residual=residual is not None,
                               acc_in_out=acc_in_out,
                               tk=tk)

    out_bytes = jnp.dtype(out_dtype).itemsize
    cost = pl.CostEstimate(
        flops=2 * Mp * Kp * Cp,
        transcendentals=0,
        bytes_accessed=(Mp * Kp * 2 + Kp * Cp * 2 + Mp * Cp * out_bytes
                        + (Mp * Cp * 2 if residual is not None else 0)),
    )

    # Per-step VMEM working set (double-buffered streams + resident weight),
    # with headroom, capped below v7x's 64 MiB physical VMEM.
    vmem_need = (2 * tm * tk * 2                      # bf16 patch tiles
                 + 2 * Kp * Cp * 2                    # resident bf16 weight
                 + 2 * tm * Cp * out_bytes            # output tiles
                 + (2 * tm * Cp * 2 if residual is not None else 0)
                 + (0 if acc_in_out else tm * Cp * 4))
    vmem_limit = int(min(48 * 1024 * 1024,
                         max(32 * 1024 * 1024, 2 * vmem_need)))

    scratch = [] if acc_in_out else [pltpu.VMEM((tm, Cp), jnp.float32)]

    out = pl.pallas_call(
        kernel,
        out_shape=jax.ShapeDtypeStruct((Mp, Cp), out_dtype),
        grid_spec=pltpu.PrefetchScalarGridSpec(
            num_scalar_prefetch=0,
            grid=(Mp // tm, Kp // tk),
            in_specs=in_specs,
            out_specs=pl.BlockSpec((tm, Cp), lambda i, k: (i, 0)),
            scratch_shapes=scratch,
        ),
        compiler_params=pltpu.CompilerParams(
            dimension_semantics=("parallel", "arbitrary"),
            vmem_limit_bytes=vmem_limit),
        cost_estimate=cost,
    )(*inputs)

    return out[:M, :Cout]


# --------------------------------------------------------------------------
# JAX glue: bf16 im2col, weight packing, forward
# --------------------------------------------------------------------------
def im2col(x_nhwc, ksize, stride):
    """im2col emitted directly in bf16 (zero spatial padding)."""
    N, H, W, C = x_nhwc.shape
    pad = ksize // 2
    xp = jnp.pad(x_nhwc.astype(jnp.bfloat16),
                 ((0, 0), (pad, pad), (pad, pad), (0, 0)))
    Ho = (H + 2 * pad - ksize) // stride + 1
    Wo = (W + 2 * pad - ksize) // stride + 1
    cols = []
    for kh in range(ksize):
        for kw in range(ksize):
            cols.append(xp[:, kh:kh + stride * Ho:stride,
                           kw:kw + stride * Wo:stride, :])
    p = jnp.concatenate(cols, axis=-1)                 # (N, Ho, Wo, k*k*C)
    return p.reshape(N * Ho * Wo, ksize * ksize * C), Ho, Wo


def weight_to_matrix(w_oihw):
    # PyTorch conv weight (O, I, KH, KW) -> (KH*KW*I, O), matching im2col order.
    O, I, KH, KW = w_oihw.shape
    return jnp.transpose(w_oihw, (2, 3, 1, 0)).reshape(KH * KW * I, O)


def residual_block_forward(x_nchw, params, stride):
    """ResidualBlock.forward. x_nchw: (N, Cin, H, W) float32."""
    N, Cin, H, W = x_nchw.shape
    Cout = params["w2"].shape[0]
    x = jnp.transpose(x_nchw, (0, 2, 3, 1)).astype(jnp.float32)   # NHWC

    # BatchNorm2d (training-mode batch stats, eps=1e-5), applied in f32.
    # The affine fuses into the im2col producer fusion -> no extra HBM pass.
    eps = 1e-5
    mean = jnp.mean(x, axis=(0, 1, 2))
    var = jnp.mean(jnp.square(x - mean), axis=(0, 1, 2))          # biased var
    scale = params["gamma"] * jax.lax.rsqrt(var + eps)
    shift = params["beta"] - mean * scale
    xb = x * scale + shift

    # conv1: 3x3, stride 1, fused ReLU, bf16 output (only re-read by conv2).
    p1, Ho1, Wo1 = im2col(xb, 3, 1)
    y1 = conv_matmul(p1, weight_to_matrix(params["w1"]),
                     apply_relu=True, out_dtype=jnp.bfloat16)
    y1 = y1.reshape(N, Ho1, Wo1, Cout)

    # Shortcut branch (no zeros residual is ever built); carried in bf16,
    # the actual residual add happens in f32 inside conv2's epilogue.
    if stride == 1:
        resid = x.reshape(N * H * W, Cin)              # identity (Cin == Cout)
    else:
        pg, _, _ = im2col(x, 3, 2)
        resid = conv_matmul(pg, weight_to_matrix(params["wg"]),
                            apply_relu=False, out_dtype=jnp.bfloat16)

    # conv2: 3x3, stride `stride`, fused residual add, f32 output.
    p2, Ho2, Wo2 = im2col(y1, 3, stride)
    y2 = conv_matmul(p2, weight_to_matrix(params["w2"]), residual=resid,
                     apply_relu=False, out_dtype=jnp.float32)
    out = y2.reshape(N, Ho2, Wo2, Cout)
    return jnp.transpose(out, (0, 3, 1, 2))            # back to NCHW


# --------------------------------------------------------------------------
# Pure-JAX reference (for self-check)
# --------------------------------------------------------------------------
def ref_forward(x_nchw, params, stride):
    x = x_nchw.astype(jnp.float32)
    eps = 1e-5
    mean = jnp.mean(x, axis=(0, 2, 3), keepdims=True)
    var = jnp.mean((x - mean) ** 2, axis=(0, 2, 3), keepdims=True)
    xb = (x - mean) / jnp.sqrt(var + eps) * params["gamma"].reshape(1, -1, 1, 1) \
         + params["beta"].reshape(1, -1, 1, 1)

    def conv(y, w, s):
        return jax.lax.conv_general_dilated(
            y, w, (s, s), ((1, 1), (1, 1)),
            dimension_numbers=("NCHW", "OIHW", "NCHW"))

    y = jnp.maximum(conv(xb, params["w1"], 1), 0.0)
    y = conv(y, params["w2"], stride)
    if stride == 1:
        return y + x
    return y + conv(x, params["wg"], 2)


# --------------------------------------------------------------------------
if __name__ == "__main__":
    key = jax.random.PRNGKey(0)
    k_x, k_w1, k_w2, k_wg, k_g, k_b = jax.random.split(key, 6)

    N, Cin, H, W = 2, 4, 16, 16
    Cout = 4

    x = jax.random.normal(k_x, (N, Cin, H, W), jnp.float32)
    params = {
        "gamma": jax.random.normal(k_g, (Cin,), jnp.float32) * 0.5 + 1.0,
        "beta": jax.random.normal(k_b, (Cin,), jnp.float32) * 0.1,
        "w1": jax.random.normal(k_w1, (Cout, Cin, 3, 3), jnp.float32) * 0.1,
        "w2": jax.random.normal(k_w2, (Cout, Cout, 3, 3), jnp.float32) * 0.1,
        "wg": jax.random.normal(k_wg, (Cout, Cin, 3, 3), jnp.float32) * 0.1,
    }

    fwd = jax.jit(residual_block_forward, static_argnums=2)

    for stride in (1, 2):                       # identity and downsample paths
        out = jax.block_until_ready(fwd(x, params, stride))
        ref = jax.block_until_ready(ref_forward(x, params, stride))
        assert out.shape == ref.shape, f"shape mismatch stride={stride}"
        # Tolerance reflects bf16 matmul operands, bf16 y1 feeding conv2 and a
        # bf16-carried residual (all accumulation/epilogue math stays f32).
        assert jnp.allclose(out, ref, rtol=2.5e-2, atol=2.5e-2), \
            f"mismatch vs reference (stride={stride})"

    print("KERNEL_OK")
</pallas_src>

<mosaic_0001>
module attributes {stable_mosaic.version = 11 : i64} {
  func.func @_conv_kernel(%arg0: i32, %arg1: i32, %arg2: memref<256x128xbf16, #tpu.memory_space<vmem>>, %arg3: memref<128x128xbf16, #tpu.memory_space<vmem>>, %arg4: memref<256x128xbf16, #tpu.memory_space<vmem>>, %arg5: memref<256x128xf32, #tpu.memory_space<vmem>>) attributes {dimension_semantics = [#tpu.dimension_semantics<parallel>, #tpu.dimension_semantics<arbitrary>], iteration_bounds = array<i64: 2, 1>, scalar_prefetch = 0 : i64, scratch_operands = 1 : i64, tpu.core_type = #tpu.core_type<tc>, window_params = [{transform_indices = @transform_0, window_bounds = array<i64: 256, 128>}, {pipeline_mode = #tpu.pipeline_mode<synchronous>, transform_indices = @transform_1, window_bounds = array<i64: 128, 128>}, {transform_indices = @transform_2, window_bounds = array<i64: 256, 128>}]} {
    %c0_i32 = arith.constant 0 : i32
    %0 = arith.cmpi eq, %arg1, %c0_i32 : i32
    %1 = arith.extui %0 : i1 to i32
    %c0_i32_0 = arith.constant 0 : i32
    %2 = arith.cmpi ne, %1, %c0_i32_0 : i32
    scf.if %2 {
      %cst_9 = arith.constant 0.000000e+00 : f32
      %15 = vector.broadcast %cst_9 : f32 to vector<256x128xf32>
      %c0_10 = arith.constant 0 : index
      %c0_11 = arith.constant 0 : index
      %16 = vector.load %arg5[%c0_10, %c0_11] : memref<256x128xf32, #tpu.memory_space<vmem>>, vector<256x128xf32>
      tpu.vector_store %arg5[%c0_10, %c0_11], %15 {strides = array<i32>} : memref<256x128xf32, #tpu.memory_space<vmem>>, vector<256x128xf32>,
    } else {
    }
    %c128_i32 = arith.constant 128 : i32
    %3 = arith.muli %arg1, %c128_i32 : i32
    %4 = tpu.assume_multiple %3, 128 : i32
    %5 = arith.index_cast %4 : i32 to index
    %c0 = arith.constant 0 : index
    %6 = vector.load %arg3[%5, %c0] : memref<128x128xbf16, #tpu.memory_space<vmem>>, vector<128x128xbf16>
    %c0_1 = arith.constant 0 : index
    %c0_2 = arith.constant 0 : index
    %7 = vector.load %arg5[%c0_1, %c0_2] : memref<256x128xf32, #tpu.memory_space<vmem>>, vector<256x128xf32>
    %c0_3 = arith.constant 0 : index
    %c0_4 = arith.constant 0 : index
    %8 = vector.load %arg2[%c0_3, %c0_4] : memref<256x128xbf16, #tpu.memory_space<vmem>>, vector<256x128xbf16>
    %cst = arith.constant dense<0.000000e+00> : vector<256x128xf32>
    %9 = tpu.matmul %8, %6, %cst {dimension_numbers = #tpu.dot_dimension_numbers<[1], [0], [0], [1], [0, 0, 1, 1], [], []>} : vector<256x128xbf16>, vector<128x128xbf16>, vector<256x128xf32> -> vector<256x128xf32>
    %10 = arith.addf %7, %9 : vector<256x128xf32>
    %c0_5 = arith.constant 0 : index
    %c0_6 = arith.constant 0 : index
    %11 = vector.load %arg5[%c0_5, %c0_6] : memref<256x128xf32, #tpu.memory_space<vmem>>, vector<256x128xf32>
    tpu.vector_store %arg5[%c0_5, %c0_6], %10 {strides = array<i32>} : memref<256x128xf32, #tpu.memory_space<vmem>>, vector<256x128xf32>,
    %c0_i32_7 = arith.constant 0 : i32
    %12 = arith.cmpi eq, %arg1, %c0_i32_7 : i32
    %13 = arith.extui %12 : i1 to i32
    %c0_i32_8 = arith.constant 0 : i32
    %14 = arith.cmpi ne, %13, %c0_i32_8 : i32
    scf.if %14 {
      %c0_9 = arith.constant 0 : index
      %c0_10 = arith.constant 0 : index
      %15 = vector.load %arg5[%c0_9, %c0_10] : memref<256x128xf32, #tpu.memory_space<vmem>>, vector<256x128xf32>
      %cst_11 = arith.constant 0.000000e+00 : f32
      %16 = vector.broadcast %cst_11 : f32 to vector<256x128xf32>
      %17 = arith.maximumf %15, %16 : vector<256x128xf32>
      %18 = arith.truncf %17 : vector<256x128xf32> to vector<256x128xbf16>
      %c0_12 = arith.constant 0 : index
      %c0_13 = arith.constant 0 : index
      %19 = vector.load %arg4[%c0_12, %c0_13] : memref<256x128xbf16, #tpu.memory_space<vmem>>, vector<256x128xbf16>
      tpu.vector_store %arg4[%c0_12, %c0_13], %18 {strides = array<i32>} : memref<256x128xbf16, #tpu.memory_space<vmem>>, vector<256x128xbf16>,
    } else {
    }
    return
  }
  func.func @transform_0(%arg0: i32, %arg1: i32) -> (i32, i32) {
    %c0_i32 = arith.constant 0 : i32
    return %arg0, %arg1 : i32, i32
  }
  func.func @transform_1(%arg0: i32, %arg1: i32) -> (i32, i32) {
    %c0_i32 = arith.constant 0 : i32
    %c0_i32_0 = arith.constant 0 : i32
    %c0_i32_1 = arith.constant 0 : i32
    return %c0_i32, %c0_i32_0 : i32, i32
  }
  func.func @transform_2(%arg0: i32, %arg1: i32) -> (i32, i32) {
    %c0_i32 = arith.constant 0 : i32
    %c0_i32_0 = arith.constant 0 : i32
    return %arg0, %c0_i32 : i32, i32
  }
}

module attributes {stable_mosaic.version = 11 : i64} {
  func.func @_conv_kernel(%arg0: i32, %arg1: i32, %arg2: memref<256x128xbf16, #tpu.memory_space<vmem>>, %arg3: memref<128x128xbf16, #tpu.memory_space<vmem>>, %arg4: memref<256x128xbf16, #tpu.memory_space<vmem>>, %arg5: memref<256x128xf32, #tpu.memory_space<vmem>>) attributes {dimension_semantics = [#tpu.dimension_semantics<parallel>, #tpu.dimension_semantics<arbitrary>], iteration_bounds = array<i64: 2, 1>, scalar_prefetch = 0 : i64, scratch_operands = 0 : i64, tpu.core_type = #tpu.core_type<tc>, window_params = [{transform_indices = @transform_0, window_bounds = array<i64: 256, 128>}, {pipeline_mode = #tpu.pipeline_mode<synchronous>, transform_indices = @transform_1, window_bounds = array<i64: 128, 128>}, {transform_indices = @transform_2, window_bounds = array<i64: 256, 128>}, {transform_indices = @transform_3, window_bounds = array<i64: 256, 128>}]} {
    %c0_i32 = arith.constant 0 : i32
    %0 = arith.cmpi eq, %arg1, %c0_i32 : i32
    %1 = arith.extui %0 : i1 to i32
    %c0_i32_0 = arith.constant 0 : i32
    %2 = arith.cmpi ne, %1, %c0_i32_0 : i32
    scf.if %2 {
      %cst_9 = arith.constant 0.000000e+00 : f32
      %15 = vector.broadcast %cst_9 : f32 to vector<256x128xf32>
      %c0_10 = arith.constant 0 : index
      %c0_11 = arith.constant 0 : index
      %16 = vector.load %arg5[%c0_10, %c0_11] : memref<256x128xf32, #tpu.memory_space<vmem>>, vector<256x128xf32>
      tpu.vector_store %arg5[%c0_10, %c0_11], %15 {strides = array<i32>} : memref<256x128xf32, #tpu.memory_space<vmem>>, vector<256x128xf32>,
    } else {
    }
    %c128_i32 = arith.constant 128 : i32
    %3 = arith.muli %arg1, %c128_i32 : i32
    %4 = tpu.assume_multiple %3, 128 : i32
    %5 = arith.index_cast %4 : i32 to index
    %c0 = arith.constant 0 : index
    %6 = vector.load %arg3[%5, %c0] : memref<128x128xbf16, #tpu.memory_space<vmem>>, vector<128x128xbf16>
    %c0_1 = arith.constant 0 : index
    %c0_2 = arith.constant 0 : index
    %7 = vector.load %arg5[%c0_1, %c0_2] : memref<256x128xf32, #tpu.memory_space<vmem>>, vector<256x128xf32>
    %c0_3 = arith.constant 0 : index
    %c0_4 = arith.constant 0 : index
    %8 = vector.load %arg2[%c0_3, %c0_4] : memref<256x128xbf16, #tpu.memory_space<vmem>>, vector<256x128xbf16>
    %cst = arith.constant dense<0.000000e+00> : vector<256x128xf32>
    %9 = tpu.matmul %8, %6, %cst {dimension_numbers = #tpu.dot_dimension_numbers<[1], [0], [0], [1], [0, 0, 1, 1], [], []>} : vector<256x128xbf16>, vector<128x128xbf16>, vector<256x128xf32> -> vector<256x128xf32>
    %10 = arith.addf %7, %9 : vector<256x128xf32>
    %c0_5 = arith.constant 0 : index
    %c0_6 = arith.constant 0 : index
    %11 = vector.load %arg5[%c0_5, %c0_6] : memref<256x128xf32, #tpu.memory_space<vmem>>, vector<256x128xf32>
    tpu.vector_store %arg5[%c0_5, %c0_6], %10 {strides = array<i32>} : memref<256x128xf32, #tpu.memory_space<vmem>>, vector<256x128xf32>,
    %c0_i32_7 = arith.constant 0 : i32
    %12 = arith.cmpi eq, %arg1, %c0_i32_7 : i32
    %13 = arith.extui %12 : i1 to i32
    %c0_i32_8 = arith.constant 0 : i32
    %14 = arith.cmpi ne, %13, %c0_i32_8 : i32
    scf.if %14 {
      %c0_9 = arith.constant 0 : index
      %c0_10 = arith.constant 0 : index
      %15 = vector.load %arg5[%c0_9, %c0_10] : memref<256x128xf32, #tpu.memory_space<vmem>>, vector<256x128xf32>
      %c0_11 = arith.constant 0 : index
      %c0_12 = arith.constant 0 : index
      %16 = vector.load %arg4[%c0_11, %c0_12] : memref<256x128xbf16, #tpu.memory_space<vmem>>, vector<256x128xbf16>
      %17 = arith.extf %16 : vector<256x128xbf16> to vector<256x128xf32>
      %18 = arith.addf %15, %17 : vector<256x128xf32>
      %c0_13 = arith.constant 0 : index
      %c0_14 = arith.constant 0 : index
      %19 = vector.load %arg5[%c0_13, %c0_14] : memref<256x128xf32, #tpu.memory_space<vmem>>, vector<256x128xf32>
      tpu.vector_store %arg5[%c0_13, %c0_14], %18 {strides = array<i32>} : memref<256x128xf32, #tpu.memory_space<vmem>>, vector<256x128xf32>,
    } else {
    }
    return
  }
  func.func @transform_0(%arg0: i32, %arg1: i32) -> (i32, i32) {
    %c0_i32 = arith.constant 0 : i32
    return %arg0, %arg1 : i32, i32
  }
  func.func @transform_1(%arg0: i32, %arg1: i32) -> (i32, i32) {
    %c0_i32 = arith.constant 0 : i32
    %c0_i32_0 = arith.constant 0 : i32
    %c0_i32_1 = arith.constant 0 : i32
    return %c0_i32, %c0_i32_0 : i32, i32
  }
  func.func @transform_2(%arg0: i32, %arg1: i32) -> (i32, i32) {
    %c0_i32 = arith.constant 0 : i32
    %c0_i32_0 = arith.constant 0 : i32
    return %arg0, %c0_i32 : i32, i32
  }
  func.func @transform_3(%arg0: i32, %arg1: i32) -> (i32, i32) {
    %c0_i32 = arith.constant 0 : i32
    %c0_i32_0 = arith.constant 0 : i32
    return %arg0, %c0_i32 : i32, i32
  }
}

</mosaic_0001>

<llo_original>
// kernel: residual_block_forward.2
$region0: #{residual_block_forward.2}
  #allocation0 [shape = 'u32[]', space=smem, size = 0x4, offset = 0x4, fixed_abs, tag = 'smem constant byte address 0x4 - core index']
  #allocation1 [shape = 'u32[144,128]{1,0:T(1,128)}', space=vmem, size = 0x12000, scoped, tag = 'internal scratch']
  #allocation2 [shape = 'f32[256,128]{1,0:T(8,128)}', space=vmem, size = 0x20000, scoped, tag = 'scratch operand']
  %s0 = inlined_call_operand.vmem [shape: bf16[512,128], index: 0, kind: input, shape index: {}]
  %s1 = inlined_call_operand.vmem [shape: bf16[128,128], index: 1, kind: input, shape index: {}]
  %s2 = inlined_call_operand.vmem [shape: bf16[512,128], index: 2, kind: output, shape index: {}]
  %s3 = sld [smem:[#allocation0]]
  $region49: #{residual_block_forward.2} parent=0
    _
  %s5 = ssub.s32 1, %s3
  %s6 = scalar_select 0, %s5, %s3
  loop: start=0, step=1, limit=4
  $region2: #{residual_block_forward.2} parent=0 // loop_pre_header
    _
  $region3: #{residual_block_forward.2} parent=0 // loop_header
    %s8 = sphi 0, %s12
    %p9 = scmp.ge.s32.totalorder %s8, 4
    %s15 = sphi 0, %s27
    %s16 = sphi 0, %s23
    %s17 = sphi 0, %s15
    %s18 = sphi 0, %s16
    %s19 = sphi 0, %s17
    %s20 = sphi 0, %s18
    %s32 = sphi 0, %s34
    %s35 = sphi 0, %s32
    %s36 = sphi 0, %s35
    %s52 = sphi 0, %s36
    %s56 = sphi 0, %s56
    %s58 = sphi 0, %s56
    %s59 = sphi 0, %s58
    %s73 = sphi 0, %s59
    %s79 = sphi 0, %s81
    %s82 = sphi 0, %s79
    %s83 = sphi 0, %s82
    %s99 = sphi 0, %s83
  $region4: #{residual_block_forward.2} parent=0 // loop_header_branch
    %11 = sbr.rel (%p9) target = $region8
  $region5: #{residual_block_forward.2} parent=0 // loop_body
    %s13 = ssub.s32 %s8, 1
    %s14 = ssub.s32 %s8, 2
    %s21 = sadd.s32 1, %s16
    %p22 = scmp.ge.s32.totalorder %s21, 1
    %s23 = scalar_select %p22, 0, %s21
    %s24 = sadd.s32 1, %s15
    %s25 = scalar_select %p22, %s24, %s15
    %p26 = scmp.ge.s32.totalorder %s25, 2
    %s27 = scalar_select %p26, 0, %s25
    %s28 = ssub.s32 %s15, %s27
    %s29 = ssub.s32 %s16, %s23
    %s30 = sor.u32 %s28, %s29
    %p31 = scmp.eq.s32.totalorder %s30, 0
    %s33 = sadd.s32 %s32, 1
    %s34 = scalar_select %p31, %s32, %s33
    %p37 = pneg %p31
    %p38 = scmp.eq.s32.totalorder %s8, 1
    %p39 = por %p37, %p38
    %p40 = scmp.ne.s32.totalorder %s32, %s35
    %p41 = scmp.eq.s32.totalorder %s8, 0
    %p42 = por %p40, %p41
    %p43 = scmp.ne.s32.totalorder %s32, %s35
    %p44 = scmp.eq.s32.totalorder %s13, 1
    %p45 = por %p43, %p44
    %p46 = scmp.ne.s32.totalorder %s35, %s36
    %p47 = scmp.eq.s32.totalorder %s13, 0
    %p48 = por %p46, %p47
    %p49 = scmp.ne.s32.totalorder %s35, %s36
    %p50 = scmp.eq.s32.totalorder %s14, 1
    %p51 = por %p49, %p50
    %p53 = scmp.ne.s32.totalorder %s36, %s52
    %p54 = scmp.eq.s32.totalorder %s14, 0
    %p55 = por %p53, %p54
    %s57 = sadd.s32 %s56, 1
    %p60 = scmp.eq.s32.totalorder %s8, 1
    %p61 = scmp.ne.s32.totalorder %s56, %s58
    %p62 = scmp.eq.s32.totalorder %s8, 0
    %p63 = por %p61, %p62
    %p64 = scmp.ne.s32.totalorder %s56, %s58
    %p65 = scmp.eq.s32.totalorder %s13, 1
    %p66 = por %p64, %p65
    %p67 = scmp.ne.s32.totalorder %s58, %s59
    %p68 = scmp.eq.s32.totalorder %s13, 0
    %p69 = por %p67, %p68
    %p70 = scmp.ne.s32.totalorder %s58, %s59
    %p71 = scmp.eq.s32.totalorder %s14, 1
    %p72 = por %p70, %p71
    %p74 = scmp.ne.s32.totalorder %s59, %s73
    %p75 = scmp.eq.s32.totalorder %s14, 0
    %p76 = por %p74, %p75
    %s77 = ssub.s32 %s15, %s27
    %p78 = scmp.eq.s32.totalorder %s77, 0
    %s80 = sadd.s32 %s79, 1
    %s81 = scalar_select %p78, %s79, %s80
    %p84 = pneg %p78
    %p85 = scmp.eq.s32.totalorder %s8, 1
    %p86 = por %p84, %p85
    %p87 = scmp.ne.s32.totalorder %s79, %s82
    %p88 = scmp.eq.s32.totalorder %s8, 0
    %p89 = por %p87, %p88
    %p90 = scmp.ne.s32.totalorder %s79, %s82
    %p91 = scmp.eq.s32.totalorder %s13, 1
    %p92 = por %p90, %p91
    %p93 = scmp.ne.s32.totalorder %s82, %s83
    %p94 = scmp.eq.s32.totalorder %s13, 0
    %p95 = por %p93, %p94
    %p96 = scmp.ne.s32.totalorder %s82, %s83
    %p97 = scmp.eq.s32.totalorder %s14, 1
    %p98 = por %p96, %p97
    %p100 = scmp.ne.s32.totalorder %s83, %s99
    %p101 = scmp.eq.s32.totalorder %s14, 0
    %p102 = por %p100, %p101
    %p103 = scmp.le.s32.totalorder 1, %s8
    %p104 = scmp.lt.s32.totalorder %s8, 3
    %p105 = pnand %p103, %p104
    %p106 = pneg %p105
    // Predicated region
    $region9: #{residual_block_forward.2} parent=5 // pred_check
      _
    $region10: #{residual_block_forward.2} parent=5 // pred_check_branch
      %108 = sbr.rel (%p105) target = $region12
    $region11: #{residual_block_forward.2} parent=5 // pred_region
      %s109 = ssub.s32 %s8, 1
      // Predicated region
      $region13: #{residual_block_forward.2} parent=11 // pred_check
        %p110 = pneg %p69
      $region14: #{residual_block_forward.2} parent=11 // pred_check_branch
        %112 = sbr.rel (%p110) target = $region16
      $region15: #{residual_block_forward.2} parent=11 // pred_region
        _
      $region16: #{residual_block_forward.2} parent=11 // pred_fallthru
        _
    $region12: #{residual_block_forward.2} parent=5 // pred_fallthru
      _
    %p113 = scmp.lt.s32.totalorder %s8, 2
    // Predicated region
    $region17: #{residual_block_forward.2} parent=5 // pred_check
      %p114 = pneg %p113
    $region18: #{residual_block_forward.2} parent=5 // pred_check_branch
      %116 = sbr.rel (%p114) target = $region20
    $region19: #{residual_block_forward.2} parent=5 // pred_region
      // Predicated region
      $region21: #{residual_block_forward.2} parent=19 // pred_check
        %p117 = pneg %p42
      $region22: #{residual_block_forward.2} parent=19 // pred_check_branch
        %119 = sbr.rel (%p117) target = $region24
      $region23: #{residual_block_forward.2} parent=19 // pred_region
        %s120 = smul.u32 32, %s15
        %p121 = scmp.lt.s32.totalorder %s120, 63
        %s122 = scalar_select %p121, %s120, 63
        %p123 = scmp.lt.s32.totalorder %s16, 0
        %s124 = scalar_select %p123, %s16, 0
        %s125 = sadd.s32 %s124, %s122
        %s126 = smul.addr %s125, 4
        %s127 = scalar_lea.vmem %s0, %s126
        %s128 = smul.u32 32, %s15
      $region24: #{residual_block_forward.2} parent=19 // pred_fallthru
        _
    $region20: #{residual_block_forward.2} parent=5 // pred_fallthru
      _
    %p129 = scmp.le.s32.totalorder 1, %s8
    %p130 = scmp.lt.s32.totalorder %s8, 3
    %p131 = pnand %p129, %p130
    %p132 = pneg %p131
    // Predicated region
    $region25: #{residual_block_forward.2} parent=5 // pred_check
      _
    $region26: #{residual_block_forward.2} parent=5 // pred_check_branch
      %134 = sbr.rel (%p131) target = $region28
    $region27: #{residual_block_forward.2} parent=5 // pred_region
      %s135 = ssub.s32 %s8, 1
      %s136 = smul.u32 32, %s17
      %p137 = scmp.lt.s32.totalorder %s136, 63
      %s138 = scalar_select %p137, %s136, 63
      %p139 = scmp.lt.s32.totalorder %s18, 0
      %s140 = scalar_select %p139, %s18, 0
      %s141 = sadd.s32 %s140, %s138
      %s142 = smul.addr %s141, 4
      %s143 = scalar_lea.vmem %s0, %s142
      %p144 = pneg %p48
      %p145 = pneg %p45
      %p146 = pneg %p69
      %p147 = pneg %p66
      %p148 = pneg %p95
      %p149 = pneg %p92
      %s150 = smul.u32 32, %s17
      %p151 = scmp.lt.s32.totalorder %s150, 63
      %s152 = scalar_select %p151, %s150, 63
      %s153 = smul.addr %s152, 4
      %s154 = scalar_lea.vmem %s2, %s153
      %s155 = smul.u32 32, %s17
      %p156 = scmp.lt.s32.totalorder %s155, 63
      %s157 = scalar_select %p156, %s155, 63
      %p158 = scmp.lt.s32.totalorder %s18, 0
      %s159 = scalar_select %p158, %s18, 0
      %s160 = sadd.s32 %s159, %s157
      %s161 = smul.addr %s160, 4
      %s162 = scalar_lea.vmem %s0, %s161
      %s163 = smul.u32 32, %s17
      %s164 = smul.u32 32, %s17
      %p165 = scmp.lt.s32.totalorder %s164, 63
      %s166 = scalar_select %p165, %s164, 63
      %s167 = smul.addr %s166, 4
      %s168 = scalar_lea.vmem %s2, %s167
      %s169 = smul.u32 32, %s17
      %p171 = scmp.eq.s32.totalorder %s18, 0
      // Predicated region
      $region29: #{residual_block_forward.2} parent=27 // pred_check
        %p172 = pneg %p171
      $region30: #{residual_block_forward.2} parent=27 // pred_check_branch
        %174 = sbr.rel (%p172) target = $region32
      $region31: #{residual_block_forward.2} parent=27 // pred_region
        %175 = vst [vmem:[#allocation2] sm:$0xff] 0.0
        %176 = vst [vmem:[#allocation2 + $0x8] sm:$0xff] 0.0
        %177 = vst [vmem:[#allocation2 + $0x10] sm:$0xff] 0.0
        %178 = vst [vmem:[#allocation2 + $0x18] sm:$0xff] 0.0
        %179 = vst [vmem:[#allocation2 + $0x20] sm:$0xff] 0.0
        %180 = vst [vmem:[#allocation2 + $0x28] sm:$0xff] 0.0
        %181 = vst [vmem:[#allocation2 + $0x30] sm:$0xff] 0.0
        %182 = vst [vmem:[#allocation2 + $0x38] sm:$0xff] 0.0
        %183 = vst [vmem:[#allocation2 + $0x40] sm:$0xff] 0.0
        %184 = vst [vmem:[#allocation2 + $0x48] sm:$0xff] 0.0
        %185 = vst [vmem:[#allocation2 + $0x50] sm:$0xff] 0.0
        %186 = vst [vmem:[#allocation2 + $0x58] sm:$0xff] 0.0
        %187 = vst [vmem:[#allocation2 + $0x60] sm:$0xff] 0.0
        %188 = vst [vmem:[#allocation2 + $0x68] sm:$0xff] 0.0
        %189 = vst [vmem:[#allocation2 + $0x70] sm:$0xff] 0.0
        %190 = vst [vmem:[#allocation2 + $0x78] sm:$0xff] 0.0
        %191 = vst [vmem:[#allocation2 + $0x80] sm:$0xff] 0.0
        %192 = vst [vmem:[#allocation2 + $0x88] sm:$0xff] 0.0
        %193 = vst [vmem:[#allocation2 + $0x90] sm:$0xff] 0.0
        %194 = vst [vmem:[#allocation2 + $0x98] sm:$0xff] 0.0
        %195 = vst [vmem:[#allocation2 + $0xa0] sm:$0xff] 0.0
        %196 = vst [vmem:[#allocation2 + $0xa8] sm:$0xff] 0.0
        %197 = vst [vmem:[#allocation2 + $0xb0] sm:$0xff] 0.0
        %198 = vst [vmem:[#allocation2 + $0xb8] sm:$0xff] 0.0
        %199 = vst [vmem:[#allocation2 + $0xc0] sm:$0xff] 0.0
        %200 = vst [vmem:[#allocation2 + $0xc8] sm:$0xff] 0.0
        %201 = vst [vmem:[#allocation2 + $0xd0] sm:$0xff] 0.0
        %202 = vst [vmem:[#allocation2 + $0xd8] sm:$0xff] 0.0
        %203 = vst [vmem:[#allocation2 + $0xe0] sm:$0xff] 0.0
        %204 = vst [vmem:[#allocation2 + $0xe8] sm:$0xff] 0.0
        %205 = vst [vmem:[#allocation2 + $0xf0] sm:$0xff] 0.0
        %206 = vst [vmem:[#allocation2 + $0xf8] sm:$0xff] 0.0
      $region32: #{residual_block_forward.2} parent=27 // pred_fallthru
        _
      %s207 = smul.u32 %s18, 128
      %s208 = sshra.s32 %s207, 3
      %s209 = sand.u32 %s207, 7
      %s210 = smul.addr %s208, 4
      %s211 = scalar_lea.vmem %s1, %s210
      %v212 = vld [vmem:[%s211] sm:$0xf]
      %v213 = vld [vmem:[%s211 + $0x4] sm:$0xf]
      %v214 = vld [vmem:[%s211 + $0x8] sm:$0xf]
      %v215 = vld [vmem:[%s211 + $0xc] sm:$0xf]
      %v216 = vld [vmem:[%s211 + $0x10] sm:$0xf]
      %v217 = vld [vmem:[%s211 + $0x14] sm:$0xf]
      %v218 = vld [vmem:[%s211 + $0x18] sm:$0xf]
      %v219 = vld [vmem:[%s211 + $0x1c] sm:$0xf]
      %v220 = vld [vmem:[%s211 + $0x20] sm:$0xf]
      %v221 = vld [vmem:[%s211 + $0x24] sm:$0xf]
      %v222 = vld [vmem:[%s211 + $0x28] sm:$0xf]
      %v223 = vld [vmem:[%s211 + $0x2c] sm:$0xf]
      %v224 = vld [vmem:[%s211 + $0x30] sm:$0xf]
      %v225 = vld [vmem:[%s211 + $0x34] sm:$0xf]
      %v226 = vld [vmem:[%s211 + $0x38] sm:$0xf]
      %v227 = vld [vmem:[%s211 + $0x3c] sm:$0xf]
      %v228 = vld [vmem:[#allocation2] sm:$0xff]
      %v229 = vld [vmem:[#allocation2 + $0x8] sm:$0xff]
      %v230 = vld [vmem:[#allocation2 + $0x10] sm:$0xff]
      %v231 = vld [vmem:[#allocation2 + $0x18] sm:$0xff]
      %v232 = vld [vmem:[#allocation2 + $0x20] sm:$0xff]
      %v233 = vld [vmem:[#allocation2 + $0x28] sm:$0xff]
      %v234 = vld [vmem:[#allocation2 + $0x30] sm:$0xff]
      %v235 = vld [vmem:[#allocation2 + $0x38] sm:$0xff]
      %v236 = vld [vmem:[#allocation2 + $0x40] sm:$0xff]
      %v237 = vld [vmem:[#allocation2 + $0x48] sm:$0xff]
      %v238 = vld [vmem:[#allocation2 + $0x50] sm:$0xff]
      %v239 = vld [vmem:[#allocation2 + $0x58] sm:$0xff]
      %v240 = vld [vmem:[#allocation2 + $0x60] sm:$0xff]
      %v241 = vld [vmem:[#allocation2 + $0x68] sm:$0xff]
      %v242 = vld [vmem:[#allocation2 + $0x70] sm:$0xff]
      %v243 = vld [vmem:[#allocation2 + $0x78] sm:$0xff]
      %v244 = vld [vmem:[#allocation2 + $0x80] sm:$0xff]
      %v245 = vld [vmem:[#allocation2 + $0x88] sm:$0xff]
      %v246 = vld [vmem:[#allocation2 + $0x90] sm:$0xff]
      %v247 = vld [vmem:[#allocation2 + $0x98] sm:$0xff]
      %v248 = vld [vmem:[#allocation2 + $0xa0] sm:$0xff]
      %v249 = vld [vmem:[#allocation2 + $0xa8] sm:$0xff]
      %v250 = vld [vmem:[#allocation2 + $0xb0] sm:$0xff]
      %v251 = vld [vmem:[#allocation2 + $0xb8] sm:$0xff]
      %v252 = vld [vmem:[#allocation2 + $0xc0] sm:$0xff]
      %v253 = vld [vmem:[#allocation2 + $0xc8] sm:$0xff]
      %v254 = vld [vmem:[#allocation2 + $0xd0] sm:$0xff]
      %v255 = vld [vmem:[#allocation2 + $0xd8] sm:$0xff]
      %v256 = vld [vmem:[#allocation2 + $0xe0] sm:$0xff]
      %v257 = vld [vmem:[#allocation2 + $0xe8] sm:$0xff]
      %v258 = vld [vmem:[#allocation2 + $0xf0] sm:$0xff]
      %v259 = vld [vmem:[#allocation2 + $0xf8] sm:$0xff]
      %v260 = vld [vmem:[%s162] sm:$0xf]
      %v261 = vld [vmem:[%s162 + $0x4] sm:$0xf]
      %v262 = vld [vmem:[%s162 + $0x8] sm:$0xf]
      %v263 = vld [vmem:[%s162 + $0xc] sm:$0xf]
      %v264 = vld [vmem:[%s162 + $0x10] sm:$0xf]
      %v265 = vld [vmem:[%s162 + $0x14] sm:$0xf]
      %v266 = vld [vmem:[%s162 + $0x18] sm:$0xf]
      %v267 = vld [vmem:[%s162 + $0x1c] sm:$0xf]
      %v268 = vld [vmem:[%s162 + $0x20] sm:$0xf]
      %v269 = vld [vmem:[%s162 + $0x24] sm:$0xf]
      %v270 = vld [vmem:[%s162 + $0x28] sm:$0xf]
      %v271 = vld [vmem:[%s162 + $0x2c] sm:$0xf]
      %v272 = vld [vmem:[%s162 + $0x30] sm:$0xf]
      %v273 = vld [vmem:[%s162 + $0x34] sm:$0xf]
      %v274 = vld [vmem:[%s162 + $0x38] sm:$0xf]
      %v275 = vld [vmem:[%s162 + $0x3c] sm:$0xf]
      %v276 = vld [vmem:[%s162 + $0x40] sm:$0xf]
      %v277 = vld [vmem:[%s162 + $0x44] sm:$0xf]
      %v278 = vld [vmem:[%s162 + $0x48] sm:$0xf]
      %v279 = vld [vmem:[%s162 + $0x4c] sm:$0xf]
      %v280 = vld [vmem:[%s162 + $0x50] sm:$0xf]
      %v281 = vld [vmem:[%s162 + $0x54] sm:$0xf]
      %v282 = vld [vmem:[%s162 + $0x58] sm:$0xf]
      %v283 = vld [vmem:[%s162 + $0x5c] sm:$0xf]
      %v284 = vld [vmem:[%s162 + $0x60] sm:$0xf]
      %v285 = vld [vmem:[%s162 + $0x64] sm:$0xf]
      %v286 = vld [vmem:[%s162 + $0x68] sm:$0xf]
      %v287 = vld [vmem:[%s162 + $0x6c] sm:$0xf]
      %v288 = vld [vmem:[%s162 + $0x70] sm:$0xf]
      %v289 = vld [vmem:[%s162 + $0x74] sm:$0xf]
      %v290 = vld [vmem:[%s162 + $0x78] sm:$0xf]
      %v291 = vld [vmem:[%s162 + $0x7c] sm:$0xf]
      %v324 = vunpack.c.l.b16 %v260
      %v325 = vunpack.c.l.b16 %v261
      %v326 = vunpack.c.l.b16 %v262
      %v327 = vunpack.c.l.b16 %v263
      %v328 = vunpack.c.l.b16 %v264
      %v329 = vunpack.c.l.b16 %v265
      %v330 = vunpack.c.l.b16 %v266
      %v331 = vunpack.c.l.b16 %v267
      %v332 = vunpack.c.l.b16 %v268
      %v333 = vunpack.c.l.b16 %v269
      %v334 = vunpack.c.l.b16 %v270
      %v335 = vunpack.c.l.b16 %v271
      %v336 = vunpack.c.l.b16 %v272
      %v337 = vunpack.c.l.b16 %v273
      %v338 = vunpack.c.l.b16 %v274
      %v339 = vunpack.c.l.b16 %v275
      %v340 = vunpack.c.l.b16 %v276
      %v341 = vunpack.c.l.b16 %v277
      %v342 = vunpack.c.l.b16 %v278
      %v343 = vunpack.c.l.b16 %v279
      %v344 = vunpack.c.l.b16 %v280
      %v345 = vunpack.c.l.b16 %v281
      %v346 = vunpack.c.l.b16 %v282
      %v347 = vunpack.c.l.b16 %v283
      %v348 = vunpack.c.l.b16 %v284
      %v349 = vunpack.c.l.b16 %v285
      %v350 = vunpack.c.l.b16 %v286
      %v351 = vunpack.c.l.b16 %v287
      %v352 = vunpack.c.l.b16 %v288
      %v353 = vunpack.c.l.b16 %v289
      %v354 = vunpack.c.l.b16 %v290
      %v355 = vunpack.c.l.b16 %v291
      %v356 = vpack.c.b16 %v325, %v324
      %v357 = vpack.c.b16 %v327, %v326
      %v358 = vpack.c.b16 %v329, %v328
      %v359 = vpack.c.b16 %v331, %v330
      %v360 = vpack.c.b16 %v333, %v332
      %v361 = vpack.c.b16 %v335, %v334
      %v362 = vpack.c.b16 %v337, %v336
      %v363 = vpack.c.b16 %v339, %v338
      %v364 = vpack.c.b16 %v341, %v340
      %v365 = vpack.c.b16 %v343, %v342
      %v366 = vpack.c.b16 %v345, %v344
      %v367 = vpack.c.b16 %v347, %v346
      %v368 = vpack.c.b16 %v349, %v348
      %v369 = vpack.c.b16 %v351, %v350
      %v370 = vpack.c.b16 %v353, %v352
      %v371 = vpack.c.b16 %v355, %v354
      %v404 = vunpack.c.l.b16 %v212
      %v405 = vunpack.c.l.b16 %v213
      %v406 = vunpack.c.l.b16 %v214
      %v407 = vunpack.c.l.b16 %v215
      %v408 = vunpack.c.l.b16 %v216
      %v409 = vunpack.c.l.b16 %v217
      %v410 = vunpack.c.l.b16 %v218
      %v411 = vunpack.c.l.b16 %v219
      %v412 = vunpack.c.l.b16 %v220
      %v413 = vunpack.c.l.b16 %v221
      %v414 = vunpack.c.l.b16 %v222
      %v415 = vunpack.c.l.b16 %v223
      %v416 = vunpack.c.l.b16 %v224
      %v417 = vunpack.c.l.b16 %v225
      %v418 = vunpack.c.l.b16 %v226
      %v419 = vunpack.c.l.b16 %v227
      %v420 = vpack.c.b16 %v405, %v404
      %v421 = vpack.c.b16 %v407, %v406
      %v422 = vpack.c.b16 %v409, %v408
      %v423 = vpack.c.b16 %v411, %v410
      %v424 = vpack.c.b16 %v413, %v412
      %v425 = vpack.c.b16 %v415, %v414
      %v426 = vpack.c.b16 %v417, %v416
      %v427 = vpack.c.b16 %v419, %v418
      %436 = vmatprep.subr.bf16.mxu0 0
      %437 = vmatpush1.bf16.msra.mxu0 %v420
      %438 = vmatprep.subr.bf16.mxu0 0
      %439 = vmatpush1.bf16.msra.mxu0 %v421
      %440 = vmatprep.subr.bf16.mxu0 0
      %441 = vmatpush1.bf16.msra.mxu0 %v422
      %442 = vmatprep.subr.bf16.mxu0 0
      %443 = vmatpush1.bf16.msra.mxu0 %v423
      %444 = vmatprep.subr.bf16.mxu0 0
      %445 = vmatpush1.bf16.msra.mxu0 %v424
      %446 = vmatprep.subr.bf16.mxu0 0
      %447 = vmatpush1.bf16.msra.mxu0 %v425
      %448 = vmatprep.subr.bf16.mxu0 0
      %449 = vmatpush1.bf16.msra.mxu0 %v426
      %450 = vmatprep.subr.bf16.mxu0 0
      %451 = vmatpush1.bf16.msra.mxu0 %v427
      %452 = vmatprep.subr.bf16.mxu0 0
      %453 = vmatpush1.bf16.msra.mxu0 0
      %454 = vmatprep.subr.bf16.mxu0 0
      %455 = vmatpush1.bf16.msra.mxu0 0
      %456 = vmatprep.subr.bf16.mxu0 0
      %457 = vmatpush1.bf16.msra.mxu0 0
      %458 = vmatprep.subr.bf16.mxu0 0
      %459 = vmatpush1.bf16.msra.mxu0 0
      %460 = vmatprep.subr.bf16.mxu0 0
      %461 = vmatpush1.bf16.msra.mxu0 0
      %462 = vmatprep.subr.bf16.mxu0 0
      %463 = vmatpush1.bf16.msra.mxu0 0
      %464 = vmatprep.subr.bf16.mxu0 0
      %465 = vmatpush1.bf16.msra.mxu0 0
      %466 = vmatprep.subr.bf16.mxu0 0
      %467 = vmatpush1.bf16.msra.mxu0 0
      %468 = vmatprep.mubr.bf16.mxu0 0
      %469 = vmatmul.mubr.bf16.gmra.mrb[0].mxu0 %v356
      %v470 = vpop.f32.mrb[0].mxu0
      %v471 = vadd.f32 0.0, %v470
      %v472 = vpop.f32.mrb[0].mxu0
      %v473 = vpop.f32.mrb[0].mxu0
      %v474 = vadd.f32 0.0, %v473
      %v475 = vpop.f32.mrb[0].mxu0
      %476 = vmatprep.mubr.bf16.mxu0 0
      %477 = vmatmul.mubr.bf16.gmra.mrb[0].mxu0 %v357
      %v478 = vpop.f32.mrb[0].mxu0
      %v479 = vadd.f32 0.0, %v478
      %v480 = vpop.f32.mrb[0].mxu0
      %v481 = vpop.f32.mrb[0].mxu0
      %v482 = vadd.f32 0.0, %v481
      %v483 = vpop.f32.mrb[0].mxu0
      %484 = vmatprep.mubr.bf16.mxu0 0
      %485 = vmatmul.mubr.bf16.gmra.mrb[0].mxu0 %v358
      %v486 = vpop.f32.mrb[0].mxu0
      %v487 = vadd.f32 0.0, %v486
      %v488 = vpop.f32.mrb[0].mxu0
      %v489 = vpop.f32.mrb[0].mxu0
      %v490 = vadd.f32 0.0, %v489
      %v491 = vpop.f32.mrb[0].mxu0
      %492 = vmatprep.mubr.bf16.mxu0 0
      %493 = vmatmul.mubr.bf16.gmra.mrb[0].mxu0 %v359
      %v494 = vpop.f32.mrb[0].mxu0
      %v495 = vadd.f32 0.0, %v494
      %v496 = vpop.f32.mrb[0].mxu0
      %v497 = vpop.f32.mrb[0].mxu0
      %v498 = vadd.f32 0.0, %v497
      %v499 = vpop.f32.mrb[0].mxu0
      %500 = vmatprep.mubr.bf16.mxu0 0
      %501 = vmatmul.mubr.bf16.gmra.mrb[0].mxu0 %v360
      %v502 = vpop.f32.mrb[0].mxu0
      %v503 = vadd.f32 0.0, %v502
      %v504 = vpop.f32.mrb[0].mxu0
      %v505 = vpop.f32.mrb[0].mxu0
      %v506 = vadd.f32 0.0, %v505
      %v507 = vpop.f32.mrb[0].mxu0
      %508 = vmatprep.mubr.bf16.mxu0 0
      %509 = vmatmul.mubr.bf16.gmra.mrb[0].mxu0 %v361
      %v510 = vpop.f32.mrb[0].mxu0
      %v511 = vadd.f32 0.0, %v510
      %v512 = vpop.f32.mrb[0].mxu0
      %v513 = vpop.f32.mrb[0].mxu0
      %v514 = vadd.f32 0.0, %v513
      %v515 = vpop.f32.mrb[0].mxu0
      %516 = vmatprep.mubr.bf16.mxu0 0
      %517 = vmatmul.mubr.bf16.gmra.mrb[0].mxu0 %v362
      %v518 = vpop.f32.mrb[0].mxu0
      %v519 = vadd.f32 0.0, %v518
      %v520 = vpop.f32.mrb[0].mxu0
      %v521 = vpop.f32.mrb[0].mxu0
      %v522 = vadd.f32 0.0, %v521
      %v523 = vpop.f32.mrb[0].mxu0
      %524 = vmatprep.mubr.bf16.mxu0 0
      %525 = vmatmul.mubr.bf16.gmra.mrb[0].mxu0 %v363
      %v526 = vpop.f32.mrb[0].mxu0
      %v527 = vadd.f32 0.0, %v526
      %v528 = vpop.f32.mrb[0].mxu0
      %v529 = vpop.f32.mrb[0].mxu0
      %v530 = vadd.f32 0.0, %v529
      %v531 = vpop.f32.mrb[0].mxu0
      %532 = vmatprep.mubr.bf16.mxu0 0
      %533 = vmatmul.mubr.bf16.gmra.mrb[0].mxu0 %v364
      %v534 = vpop.f32.mrb[0].mxu0
      %v535 = vadd.f32 0.0, %v534
      %v536 = vpop.f32.mrb[0].mxu0
      %v537 = vpop.f32.mrb[0].mxu0
      %v538 = vadd.f32 0.0, %v537
      %v539 = vpop.f32.mrb[0].mxu0
      %540 = vmatprep.mubr.bf16.mxu0 0
      %541 = vmatmul.mubr.bf16.gmra.mrb[0].mxu0 %v365
      %v542 = vpop.f32.mrb[0].mxu0
      %v543 = vadd.f32 0.0, %v542
      %v544 = vpop.f32.mrb[0].mxu0
      %v545 = vpop.f32.mrb[0].mxu0
      %v546 = vadd.f32 0.0, %v545
      %v547 = vpop.f32.mrb[0].mxu0
      %548 = vmatprep.mubr.bf16.mxu0 0
      %549 = vmatmul.mubr.bf16.gmra.mrb[0].mxu0 %v366
      %v550 = vpop.f32.mrb[0].mxu0
      %v551 = vadd.f32 0.0, %v550
      %v552 = vpop.f32.mrb[0].mxu0
      %v553 = vpop.f32.mrb[0].mxu0
      %v554 = vadd.f32 0.0, %v553
      %v555 = vpop.f32.mrb[0].mxu0
      %556 = vmatprep.mubr.bf16.mxu0 0
      %557 = vmatmul.mubr.bf16.gmra.mrb[0].mxu0 %v367
      %v558 = vpop.f32.mrb[0].mxu0
      %v559 = vadd.f32 0.0, %v558
      %v560 = vpop.f32.mrb[0].mxu0
      %v561 = vpop.f32.mrb[0].mxu0
      %v562 = vadd.f32 0.0, %v561
      %v563 = vpop.f32.mrb[0].mxu0
      %564 = vmatprep.mubr.bf16.mxu0 0
      %565 = vmatmul.mubr.bf16.gmra.mrb[0].mxu0 %v368
      %v566 = vpop.f32.mrb[0].mxu0
      %v567 = vadd.f32 0.0, %v566
      %v568 = vpop.f32.mrb[0].mxu0
      %v569 = vpop.f32.mrb[0].mxu0
      %v570 = vadd.f32 0.0, %v569
      %v571 = vpop.f32.mrb[0].mxu0
      %572 = vmatprep.mubr.bf16.mxu0 0
      %573 = vmatmul.mubr.bf16.gmra.mrb[0].mxu0 %v369
      %v574 = vpop.f32.mrb[0].mxu0
      %v575 = vadd.f32 0.0, %v574
      %v576 = vpop.f32.mrb[0].mxu0
      %v577 = vpop.f32.mrb[0].mxu0
      %v578 = vadd.f32 0.0, %v577
      %v579 = vpop.f32.mrb[0].mxu0
      %580 = vmatprep.mubr.bf16.mxu0 0
      %581 = vmatmul.mubr.bf16.gmra.mrb[0].mxu0 %v370
      %v582 = vpop.f32.mrb[0].mxu0
      %v583 = vadd.f32 0.0, %v582
      %v584 = vpop.f32.mrb[0].mxu0
      %v585 = vpop.f32.mrb[0].mxu0
      %v586 = vadd.f32 0.0, %v585
      %v587 = vpop.f32.mrb[0].mxu0
      %588 = vmatprep.mubr.bf16.mxu0 0
      %589 = vmatmul.mubr.bf16.gmra.mrb[0].mxu0 %v371
      %v590 = vpop.f32.mrb[0].mxu0
      %v591 = vadd.f32 0.0, %v590
      %v592 = vpop.f32.mrb[0].mxu0
      %v593 = vpop.f32.mrb[0].mxu0
      %v594 = vadd.f32 0.0, %v593
      %v595 = vpop.f32.mrb[0].mxu0
      %596 = vdwg.mxu0
      %v597 = vadd.f32 %v228, %v471
      %v598 = vadd.f32 %v229, %v474
      %v599 = vadd.f32 %v230, %v479
      %v600 = vadd.f32 %v231, %v482
      %v601 = vadd.f32 %v232, %v487
      %v602 = vadd.f32 %v233, %v490
      %v603 = vadd.f32 %v234, %v495
      %v604 = vadd.f32 %v235, %v498
      %v605 = vadd.f32 %v236, %v503
      %v606 = vadd.f32 %v237, %v506
      %v607 = vadd.f32 %v238, %v511
      %v608 = vadd.f32 %v239, %v514
      %v609 = vadd.f32 %v240, %v519
      %v610 = vadd.f32 %v241, %v522
      %v611 = vadd.f32 %v242, %v527
      %v612 = vadd.f32 %v243, %v530
      %v613 = vadd.f32 %v244, %v535
      %v614 = vadd.f32 %v245, %v538
      %v615 = vadd.f32 %v246, %v543
      %v616 = vadd.f32 %v247, %v546
      %v617 = vadd.f32 %v248, %v551
      %v618 = vadd.f32 %v249, %v554
      %v619 = vadd.f32 %v250, %v559
      %v620 = vadd.f32 %v251, %v562
      %v621 = vadd.f32 %v252, %v567
      %v622 = vadd.f32 %v253, %v570
      %v623 = vadd.f32 %v254, %v575
      %v624 = vadd.f32 %v255, %v578
      %v625 = vadd.f32 %v256, %v583
      %v626 = vadd.f32 %v257, %v586
      %v627 = vadd.f32 %v258, %v591
      %v628 = vadd.f32 %v259, %v594
      %629 = vst [vmem:[#allocation2] sm:$0xff] %v597
      %630 = vst [vmem:[#allocation2 + $0x8] sm:$0xff] %v598
      %631 = vst [vmem:[#allocation2 + $0x10] sm:$0xff] %v599
      %632 = vst [vmem:[#allocation2 + $0x18] sm:$0xff] %v600
      %633 = vst [vmem:[#allocation2 + $0x20] sm:$0xff] %v601
      %634 = vst [vmem:[#allocation2 + $0x28] sm:$0xff] %v602
      %635 = vst [vmem:[#allocation2 + $0x30] sm:$0xff] %v603
      %636 = vst [vmem:[#allocation2 + $0x38] sm:$0xff] %v604
      %637 = vst [vmem:[#allocation2 + $0x40] sm:$0xff] %v605
      %638 = vst [vmem:[#allocation2 + $0x48] sm:$0xff] %v606
      %639 = vst [vmem:[#allocation2 + $0x50] sm:$0xff] %v607
      %640 = vst [vmem:[#allocation2 + $0x58] sm:$0xff] %v608
      %641 = vst [vmem:[#allocation2 + $0x60] sm:$0xff] %v609
      %642 = vst [vmem:[#allocation2 + $0x68] sm:$0xff] %v610
      %643 = vst [vmem:[#allocation2 + $0x70] sm:$0xff] %v611
      %644 = vst [vmem:[#allocation2 + $0x78] sm:$0xff] %v612
      %645 = vst [vmem:[#allocation2 + $0x80] sm:$0xff] %v613
      %646 = vst [vmem:[#allocation2 + $0x88] sm:$0xff] %v614
      %647 = vst [vmem:[#allocation2 + $0x90] sm:$0xff] %v615
      %648 = vst [vmem:[#allocation2 + $0x98] sm:$0xff] %v616
      %649 = vst [vmem:[#allocation2 + $0xa0] sm:$0xff] %v617
      %650 = vst [vmem:[#allocation2 + $0xa8] sm:$0xff] %v618
      %651 = vst [vmem:[#allocation2 + $0xb0] sm:$0xff] %v619
      %652 = vst [vmem:[#allocation2 + $0xb8] sm:$0xff] %v620
      %653 = vst [vmem:[#allocation2 + $0xc0] sm:$0xff] %v621
      %654 = vst [vmem:[#allocation2 + $0xc8] sm:$0xff] %v622
      %655 = vst [vmem:[#allocation2 + $0xd0] sm:$0xff] %v623
      %656 = vst [vmem:[#allocation2 + $0xd8] sm:$0xff] %v624
      %657 = vst [vmem:[#allocation2 + $0xe0] sm:$0xff] %v625
      %658 = vst [vmem:[#allocation2 + $0xe8] sm:$0xff] %v626
      %659 = vst [vmem:[#allocation2 + $0xf0] sm:$0xff] %v627
      %660 = vst [vmem:[#allocation2 + $0xf8] sm:$0xff] %v628
      // Predicated region
      $region33: #{residual_block_forward.2} parent=27 // pred_check
        %p661 = pneg %p171
      $region34: #{residual_block_forward.2} parent=27 // pred_check_branch
        %663 = sbr.rel (%p661) target = $region36
      $region35: #{residual_block_forward.2} parent=27 // pred_region
        %v664 = vld [vmem:[#allocation2] sm:$0xff]
        %v665 = vld [vmem:[#allocation2 + $0x8] sm:$0xff]
        %v666 = vld [vmem:[#allocation2 + $0x10] sm:$0xff]
        %v667 = vld [vmem:[#allocation2 + $0x18] sm:$0xff]
        %v668 = vld [vmem:[#allocation2 + $0x20] sm:$0xff]
        %v669 = vld [vmem:[#allocation2 + $0x28] sm:$0xff]
        %v670 = vld [vmem:[#allocation2 + $0x30] sm:$0xff]
        %v671 = vld [vmem:[#allocation2 + $0x38] sm:$0xff]
        %v672 = vld [vmem:[#allocation2 + $0x40] sm:$0xff]
        %v673 = vld [vmem:[#allocation2 + $0x48] sm:$0xff]
        %v674 = vld [vmem:[#allocation2 + $0x50] sm:$0xff]
        %v675 = vld [vmem:[#allocation2 + $0x58] sm:$0xff]
        %v676 = vld [vmem:[#allocation2 + $0x60] sm:$0xff]
        %v677 = vld [vmem:[#allocation2 + $0x68] sm:$0xff]
        %v678 = vld [vmem:[#allocation2 + $0x70] sm:$0xff]
        %v679 = vld [vmem:[#allocation2 + $0x78] sm:$0xff]
        %v680 = vld [vmem:[#allocation2 + $0x80] sm:$0xff]
        %v681 = vld [vmem:[#allocation2 + $0x88] sm:$0xff]
        %v682 = vld [vmem:[#allocation2 + $0x90] sm:$0xff]
        %v683 = vld [vmem:[#allocation2 + $0x98] sm:$0xff]
        %v684 = vld [vmem:[#allocation2 + $0xa0] sm:$0xff]
        %v685 = vld [vmem:[#allocation2 + $0xa8] sm:$0xff]
        %v686 = vld [vmem:[#allocation2 + $0xb0] sm:$0xff]
        %v687 = vld [vmem:[#allocation2 + $0xb8] sm:$0xff]
        %v688 = vld [vmem:[#allocation2 + $0xc0] sm:$0xff]
        %v689 = vld [vmem:[#allocation2 + $0xc8] sm:$0xff]
        %v690 = vld [vmem:[#allocation2 + $0xd0] sm:$0xff]
        %v691 = vld [vmem:[#allocation2 + $0xd8] sm:$0xff]
        %v692 = vld [vmem:[#allocation2 + $0xe0] sm:$0xff]
        %v693 = vld [vmem:[#allocation2 + $0xe8] sm:$0xff]
        %v694 = vld [vmem:[#allocation2 + $0xf0] sm:$0xff]
        %v695 = vld [vmem:[#allocation2 + $0xf8] sm:$0xff]
        %v696 = vmax.f32 %v664, 0.0
        %v697 = vmax.f32 %v665, 0.0
        %v698 = vmax.f32 %v666, 0.0
        %v699 = vmax.f32 %v667, 0.0
        %v700 = vmax.f32 %v668, 0.0
        %v701 = vmax.f32 %v669, 0.0
        %v702 = vmax.f32 %v670, 0.0
        %v703 = vmax.f32 %v671, 0.0
        %v704 = vmax.f32 %v672, 0.0
        %v705 = vmax.f32 %v673, 0.0
        %v706 = vmax.f32 %v674, 0.0
        %v707 = vmax.f32 %v675, 0.0
        %v708 = vmax.f32 %v676, 0.0
        %v709 = vmax.f32 %v677, 0.0
        %v710 = vmax.f32 %v678, 0.0
        %v711 = vmax.f32 %v679, 0.0
        %v712 = vmax.f32 %v680, 0.0
        %v713 = vmax.f32 %v681, 0.0
        %v714 = vmax.f32 %v682, 0.0
        %v715 = vmax.f32 %v683, 0.0
        %v716 = vmax.f32 %v684, 0.0
        %v717 = vmax.f32 %v685, 0.0
        %v718 = vmax.f32 %v686, 0.0
        %v719 = vmax.f32 %v687, 0.0
        %v720 = vmax.f32 %v688, 0.0
        %v721 = vmax.f32 %v689, 0.0
        %v722 = vmax.f32 %v690, 0.0
        %v723 = vmax.f32 %v691, 0.0
        %v724 = vmax.f32 %v692, 0.0
        %v725 = vmax.f32 %v693, 0.0
        %v726 = vmax.f32 %v694, 0.0
        %v727 = vmax.f32 %v695, 0.0
        %v728 = vpack.c.bf16 %v697, %v696
        %v729 = vpack.c.bf16 %v699, %v698
        %v730 = vpack.c.bf16 %v701, %v700
        %v731 = vpack.c.bf16 %v703, %v702
        %v732 = vpack.c.bf16 %v705, %v704
        %v733 = vpack.c.bf16 %v707, %v706
        %v734 = vpack.c.bf16 %v709, %v708
        %v735 = vpack.c.bf16 %v711, %v710
        %v736 = vpack.c.bf16 %v713, %v712
        %v737 = vpack.c.bf16 %v715, %v714
        %v738 = vpack.c.bf16 %v717, %v716
        %v739 = vpack.c.bf16 %v719, %v718
        %v740 = vpack.c.bf16 %v721, %v720
        %v741 = vpack.c.bf16 %v723, %v722
        %v742 = vpack.c.bf16 %v725, %v724
        %v743 = vpack.c.bf16 %v727, %v726
        %v760 = vunpack.c.l.b16 %v728
        %v761 = vunpack.c.h.b16 %v728
        %v762 = vunpack.c.l.b16 %v729
        %v763 = vunpack.c.h.b16 %v729
        %v764 = vunpack.c.l.b16 %v730
        %v765 = vunpack.c.h.b16 %v730
        %v766 = vunpack.c.l.b16 %v731
        %v767 = vunpack.c.h.b16 %v731
        %v768 = vunpack.c.l.b16 %v732
        %v769 = vunpack.c.h.b16 %v732
        %v770 = vunpack.c.l.b16 %v733
        %v771 = vunpack.c.h.b16 %v733
        %v772 = vunpack.c.l.b16 %v734
        %v773 = vunpack.c.h.b16 %v734
        %v774 = vunpack.c.l.b16 %v735
        %v775 = vunpack.c.h.b16 %v735
        %v776 = vunpack.c.l.b16 %v736
        %v777 = vunpack.c.h.b16 %v736
        %v778 = vunpack.c.l.b16 %v737
        %v779 = vunpack.c.h.b16 %v737
        %v780 = vunpack.c.l.b16 %v738
        %v781 = vunpack.c.h.b16 %v738
        %v782 = vunpack.c.l.b16 %v739
        %v783 = vunpack.c.h.b16 %v739
        %v784 = vunpack.c.l.b16 %v740
        %v785 = vunpack.c.h.b16 %v740
        %v786 = vunpack.c.l.b16 %v741
        %v787 = vunpack.c.h.b16 %v741
        %v788 = vunpack.c.l.b16 %v742
        %v789 = vunpack.c.h.b16 %v742
        %v790 = vunpack.c.l.b16 %v743
        %v791 = vunpack.c.h.b16 %v743
        %v792 = vpack.c.b16 %v760, %v760
        %v793 = vpack.c.b16 %v761, %v761
        %v794 = vpack.c.b16 %v762, %v762
        %v795 = vpack.c.b16 %v763, %v763
        %v796 = vpack.c.b16 %v764, %v764
        %v797 = vpack.c.b16 %v765, %v765
        %v798 = vpack.c.b16 %v766, %v766
        %v799 = vpack.c.b16 %v767, %v767
        %v800 = vpack.c.b16 %v768, %v768
        %v801 = vpack.c.b16 %v769, %v769
        %v802 = vpack.c.b16 %v770, %v770
        %v803 = vpack.c.b16 %v771, %v771
        %v804 = vpack.c.b16 %v772, %v772
        %v805 = vpack.c.b16 %v773, %v773
        %v806 = vpack.c.b16 %v774, %v774
        %v807 = vpack.c.b16 %v775, %v775
        %v808 = vpack.c.b16 %v776, %v776
        %v809 = vpack.c.b16 %v777, %v777
        %v810 = vpack.c.b16 %v778, %v778
        %v811 = vpack.c.b16 %v779, %v779
        %v812 = vpack.c.b16 %v780, %v780
        %v813 = vpack.c.b16 %v781, %v781
        %v814 = vpack.c.b16 %v782, %v782
        %v815 = vpack.c.b16 %v783, %v783
        %v816 = vpack.c.b16 %v784, %v784
        %v817 = vpack.c.b16 %v785, %v785
        %v818 = vpack.c.b16 %v786, %v786
        %v819 = vpack.c.b16 %v787, %v787
        %v820 = vpack.c.b16 %v788, %v788
        %v821 = vpack.c.b16 %v789, %v789
        %v822 = vpack.c.b16 %v790, %v790
        %v823 = vpack.c.b16 %v791, %v791
        %856 = vst [vmem:[%s168] sm:$0xf] %v792
        %857 = vst [vmem:[%s168 + $0x4] sm:$0xf] %v793
        %858 = vst [vmem:[%s168 + $0x8] sm:$0xf] %v794
        %859 = vst [vmem:[%s168 + $0xc] sm:$0xf] %v795
        %860 = vst [vmem:[%s168 + $0x10] sm:$0xf] %v796
        %861 = vst [vmem:[%s168 + $0x14] sm:$0xf] %v797
        %862 = vst [vmem:[%s168 + $0x18] sm:$0xf] %v798
        %863 = vst [vmem:[%s168 + $0x1c] sm:$0xf] %v799
        %864 = vst [vmem:[%s168 + $0x20] sm:$0xf] %v800
        %865 = vst [vmem:[%s168 + $0x24] sm:$0xf] %v801
        %866 = vst [vmem:[%s168 + $0x28] sm:$0xf] %v802
        %867 = vst [vmem:[%s168 + $0x2c] sm:$0xf] %v803
        %868 = vst [vmem:[%s168 + $0x30] sm:$0xf] %v804
        %869 = vst [vmem:[%s168 + $0x34] sm:$0xf] %v805
        %870 = vst [vmem:[%s168 + $0x38] sm:$0xf] %v806
        %871 = vst [vmem:[%s168 + $0x3c] sm:$0xf] %v807
        %872 = vst [vmem:[%s168 + $0x40] sm:$0xf] %v808
        %873 = vst [vmem:[%s168 + $0x44] sm:$0xf] %v809
        %874 = vst [vmem:[%s168 + $0x48] sm:$0xf] %v810
        %875 = vst [vmem:[%s168 + $0x4c] sm:$0xf] %v811
        %876 = vst [vmem:[%s168 + $0x50] sm:$0xf] %v812
        %877 = vst [vmem:[%s168 + $0x54] sm:$0xf] %v813
        %878 = vst [vmem:[%s168 + $0x58] sm:$0xf] %v814
        %879 = vst [vmem:[%s168 + $0x5c] sm:$0xf] %v815
        %880 = vst [vmem:[%s168 + $0x60] sm:$0xf] %v816
        %881 = vst [vmem:[%s168 + $0x64] sm:$0xf] %v817
        %882 = vst [vmem:[%s168 + $0x68] sm:$0xf] %v818
        %883 = vst [vmem:[%s168 + $0x6c] sm:$0xf] %v819
        %884 = vst [vmem:[%s168 + $0x70] sm:$0xf] %v820
        %885 = vst [vmem:[%s168 + $0x74] sm:$0xf] %v821
        %886 = vst [vmem:[%s168 + $0x78] sm:$0xf] %v822
        %887 = vst [vmem:[%s168 + $0x7c] sm:$0xf] %v823
      $region36: #{residual_block_forward.2} parent=27 // pred_fallthru
        _
      %s888 = smul.u32 32, %s17
      %p889 = scmp.lt.s32.totalorder %s888, 63
      %s890 = scalar_select %p889, %s888, 63
      %s891 = smul.addr %s890, 4
      %s892 = scalar_lea.vmem %s2, %s891
      // Predicated region
      $region37: #{residual_block_forward.2} parent=27 // pred_check
        %p893 = pneg %p92
      $region38: #{residual_block_forward.2} parent=27 // pred_check_branch
        %895 = sbr.rel (%p893) target = $region40
      $region39: #{residual_block_forward.2} parent=27 // pred_region
        %s896 = smul.u32 32, %s17
      $region40: #{residual_block_forward.2} parent=27 // pred_fallthru
        _
    $region28: #{residual_block_forward.2} parent=5 // pred_fallthru
      _
    %p897 = scmp.le.s32.totalorder 2, %s8
    // Predicated region
    $region41: #{residual_block_forward.2} parent=5 // pred_check
      %p898 = pneg %p897
    $region42: #{residual_block_forward.2} parent=5 // pred_check_branch
      %900 = sbr.rel (%p898) target = $region44
    $region43: #{residual_block_forward.2} parent=5 // pred_region
      %s901 = ssub.s32 %s8, 2
      // Predicated region
      $region45: #{residual_block_forward.2} parent=43 // pred_check
        %p902 = pneg %p98
      $region46: #{residual_block_forward.2} parent=43 // pred_check_branch
        %904 = sbr.rel (%p902) target = $region48
      $region47: #{residual_block_forward.2} parent=43 // pred_region
        %s905 = smul.u32 32, %s19
        %p906 = scmp.lt.s32.totalorder %s905, 63
        %s907 = scalar_select %p906, %s905, 63
        %s908 = smul.addr %s907, 4
        %s909 = scalar_lea.vmem %s2, %s908
      $region48: #{residual_block_forward.2} parent=43 // pred_fallthru
        _
    $region44: #{residual_block_forward.2} parent=5 // pred_fallthru
      _
  $region6: #{residual_block_forward.2} parent=0 // loop_footer
    %s12 = sadd.s32 1, %s8
  $region7: #{residual_block_forward.2} parent=0 // loop_footer_branch
    %7 = sbr.rel target = $region3
  $region8: #{residual_block_forward.2} parent=0 // loop_exit
    _

// kernel: residual_block_forward.3
$region0: #{residual_block_forward.3}
  #allocation0 [shape = 'u32[]', space=smem, size = 0x4, offset = 0x4, fixed_abs, tag = 'smem constant byte address 0x4 - core index']
  #allocation1 [shape = 'u32[144,128]{1,0:T(1,128)}', space=vmem, size = 0x12000, scoped, tag = 'internal scratch']
  %s0 = inlined_call_operand.vmem [shape: bf16[512,128], index: 0, kind: input, shape index: {}]
  %s1 = inlined_call_operand.vmem [shape: bf16[128,128], index: 1, kind: input, shape index: {}]
  %s2 = inlined_call_operand.vmem [shape: bf16[512,128], index: 2, kind: input, shape index: {}]
  %s3 = inlined_call_operand.vmem [shape: f32[512,128], index: 3, kind: output, shape index: {}]
  %s4 = sld [smem:[#allocation0]]
  $region53: #{residual_block_forward.3} parent=0
    _
  %s6 = ssub.s32 1, %s4
  %s7 = scalar_select 0, %s6, %s4
  loop: start=0, step=1, limit=4
  $region2: #{residual_block_forward.3} parent=0 // loop_pre_header
    _
  $region3: #{residual_block_forward.3} parent=0 // loop_header
    %s9 = sphi 0, %s13
    %p10 = scmp.ge.s32.totalorder %s9, 4
    %s16 = sphi 0, %s28
    %s17 = sphi 0, %s24
    %s18 = sphi 0, %s16
    %s19 = sphi 0, %s17
    %s20 = sphi 0, %s18
    %s21 = sphi 0, %s19
    %s33 = sphi 0, %s35
    %s36 = sphi 0, %s33
    %s37 = sphi 0, %s36
    %s53 = sphi 0, %s37
    %s57 = sphi 0, %s57
    %s59 = sphi 0, %s57
    %s60 = sphi 0, %s59
    %s74 = sphi 0, %s60
    %s80 = sphi 0, %s82
    %s83 = sphi 0, %s80
    %s84 = sphi 0, %s83
    %s100 = sphi 0, %s84
    %s106 = sphi 0, %s108
    %s109 = sphi 0, %s106
    %s110 = sphi 0, %s109
    %s126 = sphi 0, %s110
  $region4: #{residual_block_forward.3} parent=0 // loop_header_branch
    %12 = sbr.rel (%p10) target = $region8
  $region5: #{residual_block_forward.3} parent=0 // loop_body
    %s14 = ssub.s32 %s9, 1
    %s15 = ssub.s32 %s9, 2
    %s22 = sadd.s32 1, %s17
    %p23 = scmp.ge.s32.totalorder %s22, 1
    %s24 = scalar_select %p23, 0, %s22
    %s25 = sadd.s32 1, %s16
    %s26 = scalar_select %p23, %s25, %s16
    %p27 = scmp.ge.s32.totalorder %s26, 2
    %s28 = scalar_select %p27, 0, %s26
    %s29 = ssub.s32 %s16, %s28
    %s30 = ssub.s32 %s17, %s24
    %s31 = sor.u32 %s29, %s30
    %p32 = scmp.eq.s32.totalorder %s31, 0
    %s34 = sadd.s32 %s33, 1
    %s35 = scalar_select %p32, %s33, %s34
    %p38 = pneg %p32
    %p39 = scmp.eq.s32.totalorder %s9, 1
    %p40 = por %p38, %p39
    %p41 = scmp.ne.s32.totalorder %s33, %s36
    %p42 = scmp.eq.s32.totalorder %s9, 0
    %p43 = por %p41, %p42
    %p44 = scmp.ne.s32.totalorder %s33, %s36
    %p45 = scmp.eq.s32.totalorder %s14, 1
    %p46 = por %p44, %p45
    %p47 = scmp.ne.s32.totalorder %s36, %s37
    %p48 = scmp.eq.s32.totalorder %s14, 0
    %p49 = por %p47, %p48
    %p50 = scmp.ne.s32.totalorder %s36, %s37
    %p51 = scmp.eq.s32.totalorder %s15, 1
    %p52 = por %p50, %p51
    %p54 = scmp.ne.s32.totalorder %s37, %s53
    %p55 = scmp.eq.s32.totalorder %s15, 0
    %p56 = por %p54, %p55
    %s58 = sadd.s32 %s57, 1
    %p61 = scmp.eq.s32.totalorder %s9, 1
    %p62 = scmp.ne.s32.totalorder %s57, %s59
    %p63 = scmp.eq.s32.totalorder %s9, 0
    %p64 = por %p62, %p63
    %p65 = scmp.ne.s32.totalorder %s57, %s59
    %p66 = scmp.eq.s32.totalorder %s14, 1
    %p67 = por %p65, %p66
    %p68 = scmp.ne.s32.totalorder %s59, %s60
    %p69 = scmp.eq.s32.totalorder %s14, 0
    %p70 = por %p68, %p69
    %p71 = scmp.ne.s32.totalorder %s59, %s60
    %p72 = scmp.eq.s32.totalorder %s15, 1
    %p73 = por %p71, %p72
    %p75 = scmp.ne.s32.totalorder %s60, %s74
    %p76 = scmp.eq.s32.totalorder %s15, 0
    %p77 = por %p75, %p76
    %s78 = ssub.s32 %s16, %s28
    %p79 = scmp.eq.s32.totalorder %s78, 0
    %s81 = sadd.s32 %s80, 1
    %s82 = scalar_select %p79, %s80, %s81
    %p85 = pneg %p79
    %p86 = scmp.eq.s32.totalorder %s9, 1
    %p87 = por %p85, %p86
    %p88 = scmp.ne.s32.totalorder %s80, %s83
    %p89 = scmp.eq.s32.totalorder %s9, 0
    %p90 = por %p88, %p89
    %p91 = scmp.ne.s32.totalorder %s80, %s83
    %p92 = scmp.eq.s32.totalorder %s14, 1
    %p93 = por %p91, %p92
    %p94 = scmp.ne.s32.totalorder %s83, %s84
    %p95 = scmp.eq.s32.totalorder %s14, 0
    %p96 = por %p94, %p95
    %p97 = scmp.ne.s32.totalorder %s83, %s84
    %p98 = scmp.eq.s32.totalorder %s15, 1
    %p99 = por %p97, %p98
    %p101 = scmp.ne.s32.totalorder %s84, %s100
    %p102 = scmp.eq.s32.totalorder %s15, 0
    %p103 = por %p101, %p102
    %s104 = ssub.s32 %s16, %s28
    %p105 = scmp.eq.s32.totalorder %s104, 0
    %s107 = sadd.s32 %s106, 1
    %s108 = scalar_select %p105, %s106, %s107
    %p111 = pneg %p105
    %p112 = scmp.eq.s32.totalorder %s9, 1
    %p113 = por %p111, %p112
    %p114 = scmp.ne.s32.totalorder %s106, %s109
    %p115 = scmp.eq.s32.totalorder %s9, 0
    %p116 = por %p114, %p115
    %p117 = scmp.ne.s32.totalorder %s106, %s109
    %p118 = scmp.eq.s32.totalorder %s14, 1
    %p119 = por %p117, %p118
    %p120 = scmp.ne.s32.totalorder %s109, %s110
    %p121 = scmp.eq.s32.totalorder %s14, 0
    %p122 = por %p120, %p121
    %p123 = scmp.ne.s32.totalorder %s109, %s110
    %p124 = scmp.eq.s32.totalorder %s15, 1
    %p125 = por %p123, %p124
    %p127 = scmp.ne.s32.totalorder %s110, %s126
    %p128 = scmp.eq.s32.totalorder %s15, 0
    %p129 = por %p127, %p128
    %p130 = scmp.le.s32.totalorder 1, %s9
    %p131 = scmp.lt.s32.totalorder %s9, 3
    %p132 = pnand %p130, %p131
    %p133 = pneg %p132
    // Predicated region
    $region9: #{residual_block_forward.3} parent=5 // pred_check
      _
    $region10: #{residual_block_forward.3} parent=5 // pred_check_branch
      %135 = sbr.rel (%p132) target = $region12
    $region11: #{residual_block_forward.3} parent=5 // pred_region
      %s136 = ssub.s32 %s9, 1
      // Predicated region
      $region13: #{residual_block_forward.3} parent=11 // pred_check
        %p137 = pneg %p70
      $region14: #{residual_block_forward.3} parent=11 // pred_check_branch
        %139 = sbr.rel (%p137) target = $region16
      $region15: #{residual_block_forward.3} parent=11 // pred_region
        _
      $region16: #{residual_block_forward.3} parent=11 // pred_fallthru
        _
    $region12: #{residual_block_forward.3} parent=5 // pred_fallthru
      _
    %p140 = scmp.lt.s32.totalorder %s9, 2
    // Predicated region
    $region17: #{residual_block_forward.3} parent=5 // pred_check
      %p141 = pneg %p140
    $region18: #{residual_block_forward.3} parent=5 // pred_check_branch
      %143 = sbr.rel (%p141) target = $region20
    $region19: #{residual_block_forward.3} parent=5 // pred_region
      // Predicated region
      $region21: #{residual_block_forward.3} parent=19 // pred_check
        %p144 = pneg %p43
      $region22: #{residual_block_forward.3} parent=19 // pred_check_branch
        %146 = sbr.rel (%p144) target = $region24
      $region23: #{residual_block_forward.3} parent=19 // pred_region
        %s147 = smul.u32 32, %s16
        %p148 = scmp.lt.s32.totalorder %s147, 63
        %s149 = scalar_select %p148, %s147, 63
        %p150 = scmp.lt.s32.totalorder %s17, 0
        %s151 = scalar_select %p150, %s17, 0
        %s152 = sadd.s32 %s151, %s149
        %s153 = smul.addr %s152, 4
        %s154 = scalar_lea.vmem %s0, %s153
        %s155 = smul.u32 32, %s16
      $region24: #{residual_block_forward.3} parent=19 // pred_fallthru
        _
      // Predicated region
      $region25: #{residual_block_forward.3} parent=19 // pred_check
        %p156 = pneg %p90
      $region26: #{residual_block_forward.3} parent=19 // pred_check_branch
        %158 = sbr.rel (%p156) target = $region28
      $region27: #{residual_block_forward.3} parent=19 // pred_region
        %s159 = smul.u32 32, %s16
        %p160 = scmp.lt.s32.totalorder %s159, 63
        %s161 = scalar_select %p160, %s159, 63
        %s162 = smul.addr %s161, 4
        %s163 = scalar_lea.vmem %s2, %s162
        %s164 = smul.u32 32, %s16
      $region28: #{residual_block_forward.3} parent=19 // pred_fallthru
        _
    $region20: #{residual_block_forward.3} parent=5 // pred_fallthru
      _
    %p165 = scmp.le.s32.totalorder 1, %s9
    %p166 = scmp.lt.s32.totalorder %s9, 3
    %p167 = pnand %p165, %p166
    %p168 = pneg %p167
    // Predicated region
    $region29: #{residual_block_forward.3} parent=5 // pred_check
      _
    $region30: #{residual_block_forward.3} parent=5 // pred_check_branch
      %170 = sbr.rel (%p167) target = $region32
    $region31: #{residual_block_forward.3} parent=5 // pred_region
      %s171 = ssub.s32 %s9, 1
      %s172 = smul.u32 32, %s18
      %p173 = scmp.lt.s32.totalorder %s172, 63
      %s174 = scalar_select %p173, %s172, 63
      %p175 = scmp.lt.s32.totalorder %s19, 0
      %s176 = scalar_select %p175, %s19, 0
      %s177 = sadd.s32 %s176, %s174
      %s178 = smul.addr %s177, 4
      %s179 = scalar_lea.vmem %s0, %s178
      %p180 = pneg %p49
      %p181 = pneg %p46
      %p182 = pneg %p70
      %p183 = pneg %p67
      %s184 = smul.u32 32, %s18
      %p185 = scmp.lt.s32.totalorder %s184, 63
      %s186 = scalar_select %p185, %s184, 63
      %s187 = smul.addr %s186, 4
      %s188 = scalar_lea.vmem %s2, %s187
      %p189 = pneg %p96
      %p190 = pneg %p93
      %p191 = pneg %p122
      %p192 = pneg %p119
      %s193 = smul.u32 32, %s18
      %p194 = scmp.lt.s32.totalorder %s193, 63
      %s195 = scalar_select %p194, %s193, 63
      %s196 = smul.addr %s195, 8
      %s197 = scalar_lea.vmem %s3, %s196
      %s198 = smul.u32 32, %s18
      %p199 = scmp.lt.s32.totalorder %s198, 63
      %s200 = scalar_select %p199, %s198, 63
      %p201 = scmp.lt.s32.totalorder %s19, 0
      %s202 = scalar_select %p201, %s19, 0
      %s203 = sadd.s32 %s202, %s200
      %s204 = smul.addr %s203, 4
      %s205 = scalar_lea.vmem %s0, %s204
      %s206 = smul.u32 32, %s18
      %s207 = smul.u32 32, %s18
      %p208 = scmp.lt.s32.totalorder %s207, 63
      %s209 = scalar_select %p208, %s207, 63
      %s210 = smul.addr %s209, 4
      %s211 = scalar_lea.vmem %s2, %s210
      %s212 = smul.u32 32, %s18
      %s213 = smul.u32 32, %s18
      %p214 = scmp.lt.s32.totalorder %s213, 63
      %s215 = scalar_select %p214, %s213, 63
      %s216 = smul.addr %s215, 8
      %s217 = scalar_lea.vmem %s3, %s216
      %s218 = smul.u32 32, %s18
      %p220 = scmp.eq.s32.totalorder %s19, 0
      // Predicated region
      $region33: #{residual_block_forward.3} parent=31 // pred_check
        %p221 = pneg %p220
      $region34: #{residual_block_forward.3} parent=31 // pred_check_branch
        %223 = sbr.rel (%p221) target = $region36
      $region35: #{residual_block_forward.3} parent=31 // pred_region
        %224 = vst [vmem:[%s217] sm:$0xff] 0.0
        %225 = vst [vmem:[%s217 + $0x8] sm:$0xff] 0.0
        %226 = vst [vmem:[%s217 + $0x10] sm:$0xff] 0.0
        %227 = vst [vmem:[%s217 + $0x18] sm:$0xff] 0.0
        %228 = vst [vmem:[%s217 + $0x20] sm:$0xff] 0.0
        %229 = vst [vmem:[%s217 + $0x28] sm:$0xff] 0.0
        %230 = vst [vmem:[%s217 + $0x30] sm:$0xff] 0.0
        %231 = vst [vmem:[%s217 + $0x38] sm:$0xff] 0.0
        %232 = vst [vmem:[%s217 + $0x40] sm:$0xff] 0.0
        %233 = vst [vmem:[%s217 + $0x48] sm:$0xff] 0.0
        %234 = vst [vmem:[%s217 + $0x50] sm:$0xff] 0.0
        %235 = vst [vmem:[%s217 + $0x58] sm:$0xff] 0.0
        %236 = vst [vmem:[%s217 + $0x60] sm:$0xff] 0.0
        %237 = vst [vmem:[%s217 + $0x68] sm:$0xff] 0.0
        %238 = vst [vmem:[%s217 + $0x70] sm:$0xff] 0.0
        %239 = vst [vmem:[%s217 + $0x78] sm:$0xff] 0.0
        %240 = vst [vmem:[%s217 + $0x80] sm:$0xff] 0.0
        %241 = vst [vmem:[%s217 + $0x88] sm:$0xff] 0.0
        %242 = vst [vmem:[%s217 + $0x90] sm:$0xff] 0.0
        %243 = vst [vmem:[%s217 + $0x98] sm:$0xff] 0.0
        %244 = vst [vmem:[%s217 + $0xa0] sm:$0xff] 0.0
        %245 = vst [vmem:[%s217 + $0xa8] sm:$0xff] 0.0
        %246 = vst [vmem:[%s217 + $0xb0] sm:$0xff] 0.0
        %247 = vst [vmem:[%s217 + $0xb8] sm:$0xff] 0.0
        %248 = vst [vmem:[%s217 + $0xc0] sm:$0xff] 0.0
        %249 = vst [vmem:[%s217 + $0xc8] sm:$0xff] 0.0
        %250 = vst [vmem:[%s217 + $0xd0] sm:$0xff] 0.0
        %251 = vst [vmem:[%s217 + $0xd8] sm:$0xff] 0.0
        %252 = vst [vmem:[%s217 + $0xe0] sm:$0xff] 0.0
        %253 = vst [vmem:[%s217 + $0xe8] sm:$0xff] 0.0
        %254 = vst [vmem:[%s217 + $0xf0] sm:$0xff] 0.0
        %255 = vst [vmem:[%s217 + $0xf8] sm:$0xff] 0.0
      $region36: #{residual_block_forward.3} parent=31 // pred_fallthru
        _
      %s256 = smul.u32 %s19, 128
      %s257 = sshra.s32 %s256, 3
      %s258 = sand.u32 %s256, 7
      %s259 = smul.addr %s257, 4
      %s260 = scalar_lea.vmem %s1, %s259
      %v261 = vld [vmem:[%s260] sm:$0xf]
      %v262 = vld [vmem:[%s260 + $0x4] sm:$0xf]
      %v263 = vld [vmem:[%s260 + $0x8] sm:$0xf]
      %v264 = vld [vmem:[%s260 + $0xc] sm:$0xf]
      %v265 = vld [vmem:[%s260 + $0x10] sm:$0xf]
      %v266 = vld [vmem:[%s260 + $0x14] sm:$0xf]
      %v267 = vld [vmem:[%s260 + $0x18] sm:$0xf]
      %v268 = vld [vmem:[%s260 + $0x1c] sm:$0xf]
      %v269 = vld [vmem:[%s260 + $0x20] sm:$0xf]
      %v270 = vld [vmem:[%s260 + $0x24] sm:$0xf]
      %v271 = vld [vmem:[%s260 + $0x28] sm:$0xf]
      %v272 = vld [vmem:[%s260 + $0x2c] sm:$0xf]
      %v273 = vld [vmem:[%s260 + $0x30] sm:$0xf]
      %v274 = vld [vmem:[%s260 + $0x34] sm:$0xf]
      %v275 = vld [vmem:[%s260 + $0x38] sm:$0xf]
      %v276 = vld [vmem:[%s260 + $0x3c] sm:$0xf]
      %v277 = vld [vmem:[%s217] sm:$0xff]
      %v278 = vld [vmem:[%s217 + $0x8] sm:$0xff]
      %v279 = vld [vmem:[%s217 + $0x10] sm:$0xff]
      %v280 = vld [vmem:[%s217 + $0x18] sm:$0xff]
      %v281 = vld [vmem:[%s217 + $0x20] sm:$0xff]
      %v282 = vld [vmem:[%s217 + $0x28] sm:$0xff]
      %v283 = vld [vmem:[%s217 + $0x30] sm:$0xff]
      %v284 = vld [vmem:[%s217 + $0x38] sm:$0xff]
      %v285 = vld [vmem:[%s217 + $0x40] sm:$0xff]
      %v286 = vld [vmem:[%s217 + $0x48] sm:$0xff]
      %v287 = vld [vmem:[%s217 + $0x50] sm:$0xff]
      %v288 = vld [vmem:[%s217 + $0x58] sm:$0xff]
      %v289 = vld [vmem:[%s217 + $0x60] sm:$0xff]
      %v290 = vld [vmem:[%s217 + $0x68] sm:$0xff]
      %v291 = vld [vmem:[%s217 + $0x70] sm:$0xff]
      %v292 = vld [vmem:[%s217 + $0x78] sm:$0xff]
      %v293 = vld [vmem:[%s217 + $0x80] sm:$0xff]
      %v294 = vld [vmem:[%s217 + $0x88] sm:$0xff]
      %v295 = vld [vmem:[%s217 + $0x90] sm:$0xff]
      %v296 = vld [vmem:[%s217 + $0x98] sm:$0xff]
      %v297 = vld [vmem:[%s217 + $0xa0] sm:$0xff]
      %v298 = vld [vmem:[%s217 + $0xa8] sm:$0xff]
      %v299 = vld [vmem:[%s217 + $0xb0] sm:$0xff]
      %v300 = vld [vmem:[%s217 + $0xb8] sm:$0xff]
      %v301 = vld [vmem:[%s217 + $0xc0] sm:$0xff]
      %v302 = vld [vmem:[%s217 + $0xc8] sm:$0xff]
      %v303 = vld [vmem:[%s217 + $0xd0] sm:$0xff]
      %v304 = vld [vmem:[%s217 + $0xd8] sm:$0xff]
      %v305 = vld [vmem:[%s217 + $0xe0] sm:$0xff]
      %v306 = vld [vmem:[%s217 + $0xe8] sm:$0xff]
      %v307 = vld [vmem:[%s217 + $0xf0] sm:$0xff]
      %v308 = vld [vmem:[%s217 + $0xf8] sm:$0xff]
      %v309 = vld [vmem:[%s205] sm:$0xf]
      %v310 = vld [vmem:[%s205 + $0x4] sm:$0xf]
      %v311 = vld [vmem:[%s205 + $0x8] sm:$0xf]
      %v312 = vld [vmem:[%s205 + $0xc] sm:$0xf]
      %v313 = vld [vmem:[%s205 + $0x10] sm:$0xf]
      %v314 = vld [vmem:[%s205 + $0x14] sm:$0xf]
      %v315 = vld [vmem:[%s205 + $0x18] sm:$0xf]
      %v316 = vld [vmem:[%s205 + $0x1c] sm:$0xf]
      %v317 = vld [vmem:[%s205 + $0x20] sm:$0xf]
      %v318 = vld [vmem:[%s205 + $0x24] sm:$0xf]
      %v319 = vld [vmem:[%s205 + $0x28] sm:$0xf]
      %v320 = vld [vmem:[%s205 + $0x2c] sm:$0xf]
      %v321 = vld [vmem:[%s205 + $0x30] sm:$0xf]
      %v322 = vld [vmem:[%s205 + $0x34] sm:$0xf]
      %v323 = vld [vmem:[%s205 + $0x38] sm:$0xf]
      %v324 = vld [vmem:[%s205 + $0x3c] sm:$0xf]
      %v325 = vld [vmem:[%s205 + $0x40] sm:$0xf]
      %v326 = vld [vmem:[%s205 + $0x44] sm:$0xf]
      %v327 = vld [vmem:[%s205 + $0x48] sm:$0xf]
      %v328 = vld [vmem:[%s205 + $0x4c] sm:$0xf]
      %v329 = vld [vmem:[%s205 + $0x50] sm:$0xf]
      %v330 = vld [vmem:[%s205 + $0x54] sm:$0xf]
      %v331 = vld [vmem:[%s205 + $0x58] sm:$0xf]
      %v332 = vld [vmem:[%s205 + $0x5c] sm:$0xf]
      %v333 = vld [vmem:[%s205 + $0x60] sm:$0xf]
      %v334 = vld [vmem:[%s205 + $0x64] sm:$0xf]
      %v335 = vld [vmem:[%s205 + $0x68] sm:$0xf]
      %v336 = vld [vmem:[%s205 + $0x6c] sm:$0xf]
      %v337 = vld [vmem:[%s205 + $0x70] sm:$0xf]
      %v338 = vld [vmem:[%s205 + $0x74] sm:$0xf]
      %v339 = vld [vmem:[%s205 + $0x78] sm:$0xf]
      %v340 = vld [vmem:[%s205 + $0x7c] sm:$0xf]
      %v373 = vunpack.c.l.b16 %v309
      %v374 = vunpack.c.l.b16 %v310
      %v375 = vunpack.c.l.b16 %v311
      %v376 = vunpack.c.l.b16 %v312
      %v377 = vunpack.c.l.b16 %v313
      %v378 = vunpack.c.l.b16 %v314
      %v379 = vunpack.c.l.b16 %v315
      %v380 = vunpack.c.l.b16 %v316
      %v381 = vunpack.c.l.b16 %v317
      %v382 = vunpack.c.l.b16 %v318
      %v383 = vunpack.c.l.b16 %v319
      %v384 = vunpack.c.l.b16 %v320
      %v385 = vunpack.c.l.b16 %v321
      %v386 = vunpack.c.l.b16 %v322
      %v387 = vunpack.c.l.b16 %v323
      %v388 = vunpack.c.l.b16 %v324
      %v389 = vunpack.c.l.b16 %v325
      %v390 = vunpack.c.l.b16 %v326
      %v391 = vunpack.c.l.b16 %v327
      %v392 = vunpack.c.l.b16 %v328
      %v393 = vunpack.c.l.b16 %v329
      %v394 = vunpack.c.l.b16 %v330
      %v395 = vunpack.c.l.b16 %v331
      %v396 = vunpack.c.l.b16 %v332
      %v397 = vunpack.c.l.b16 %v333
      %v398 = vunpack.c.l.b16 %v334
      %v399 = vunpack.c.l.b16 %v335
      %v400 = vunpack.c.l.b16 %v336
      %v401 = vunpack.c.l.b16 %v337
      %v402 = vunpack.c.l.b16 %v338
      %v403 = vunpack.c.l.b16 %v339
      %v404 = vunpack.c.l.b16 %v340
      %v405 = vpack.c.b16 %v374, %v373
      %v406 = vpack.c.b16 %v376, %v375
      %v407 = vpack.c.b16 %v378, %v377
      %v408 = vpack.c.b16 %v380, %v379
      %v409 = vpack.c.b16 %v382, %v381
      %v410 = vpack.c.b16 %v384, %v383
      %v411 = vpack.c.b16 %v386, %v385
      %v412 = vpack.c.b16 %v388, %v387
      %v413 = vpack.c.b16 %v390, %v389
      %v414 = vpack.c.b16 %v392, %v391
      %v415 = vpack.c.b16 %v394, %v393
      %v416 = vpack.c.b16 %v396, %v395
      %v417 = vpack.c.b16 %v398, %v397
      %v418 = vpack.c.b16 %v400, %v399
      %v419 = vpack.c.b16 %v402, %v401
      %v420 = vpack.c.b16 %v404, %v403
      %v453 = vunpack.c.l.b16 %v261
      %v454 = vunpack.c.l.b16 %v262
      %v455 = vunpack.c.l.b16 %v263
      %v456 = vunpack.c.l.b16 %v264
      %v457 = vunpack.c.l.b16 %v265
      %v458 = vunpack.c.l.b16 %v266
      %v459 = vunpack.c.l.b16 %v267
      %v460 = vunpack.c.l.b16 %v268
      %v461 = vunpack.c.l.b16 %v269
      %v462 = vunpack.c.l.b16 %v270
      %v463 = vunpack.c.l.b16 %v271
      %v464 = vunpack.c.l.b16 %v272
      %v465 = vunpack.c.l.b16 %v273
      %v466 = vunpack.c.l.b16 %v274
      %v467 = vunpack.c.l.b16 %v275
      %v468 = vunpack.c.l.b16 %v276
      %v469 = vpack.c.b16 %v454, %v453
      %v470 = vpack.c.b16 %v456, %v455
      %v471 = vpack.c.b16 %v458, %v457
      %v472 = vpack.c.b16 %v460, %v459
      %v473 = vpack.c.b16 %v462, %v461
      %v474 = vpack.c.b16 %v464, %v463
      %v475 = vpack.c.b16 %v466, %v465
      %v476 = vpack.c.b16 %v468, %v467
      %485 = vmatprep.subr.bf16.mxu0 0
      %486 = vmatpush1.bf16.msra.mxu0 %v469
      %487 = vmatprep.subr.bf16.mxu0 0
      %488 = vmatpush1.bf16.msra.mxu0 %v470
      %489 = vmatprep.subr.bf16.mxu0 0
      %490 = vmatpush1.bf16.msra.mxu0 %v471
      %491 = vmatprep.subr.bf16.mxu0 0
      %492 = vmatpush1.bf16.msra.mxu0 %v472
      %493 = vmatprep.subr.bf16.mxu0 0
      %494 = vmatpush1.bf16.msra.mxu0 %v473
      %495 = vmatprep.subr.bf16.mxu0 0
      %496 = vmatpush1.bf16.msra.mxu0 %v474
      %497 = vmatprep.subr.bf16.mxu0 0
      %498 = vmatpush1.bf16.msra.mxu0 %v475
      %499 = vmatprep.subr.bf16.mxu0 0
      %500 = vmatpush1.bf16.msra.mxu0 %v476
      %501 = vmatprep.subr.bf16.mxu0 0
      %502 = vmatpush1.bf16.msra.mxu0 0
      %503 = vmatprep.subr.bf16.mxu0 0
      %504 = vmatpush1.bf16.msra.mxu0 0
      %505 = vmatprep.subr.bf16.mxu0 0
      %506 = vmatpush1.bf16.msra.mxu0 0
      %507 = vmatprep.subr.bf16.mxu0 0
      %508 = vmatpush1.bf16.msra.mxu0 0
      %509 = vmatprep.subr.bf16.mxu0 0
      %510 = vmatpush1.bf16.msra.mxu0 0
      %511 = vmatprep.subr.bf16.mxu0 0
      %512 = vmatpush1.bf16.msra.mxu0 0
      %513 = vmatprep.subr.bf16.mxu0 0
      %514 = vmatpush1.bf16.msra.mxu0 0
      %515 = vmatprep.subr.bf16.mxu0 0
      %516 = vmatpush1.bf16.msra.mxu0 0
      %517 = vmatprep.mubr.bf16.mxu0 0
      %518 = vmatmul.mubr.bf16.gmra.mrb[0].mxu0 %v405
      %v519 = vpop.f32.mrb[0].mxu0
      %v520 = vadd.f32 0.0, %v519
      %v521 = vpop.f32.mrb[0].mxu0
      %v522 = vpop.f32.mrb[0].mxu0
      %v523 = vadd.f32 0.0, %v522
      %v524 = vpop.f32.mrb[0].mxu0
      %525 = vmatprep.mubr.bf16.mxu0 0
      %526 = vmatmul.mubr.bf16.gmra.mrb[0].mxu0 %v406
      %v527 = vpop.f32.mrb[0].mxu0
      %v528 = vadd.f32 0.0, %v527
      %v529 = vpop.f32.mrb[0].mxu0
      %v530 = vpop.f32.mrb[0].mxu0
      %v531 = vadd.f32 0.0, %v530
      %v532 = vpop.f32.mrb[0].mxu0
      %533 = vmatprep.mubr.bf16.mxu0 0
      %534 = vmatmul.mubr.bf16.gmra.mrb[0].mxu0 %v407
      %v535 = vpop.f32.mrb[0].mxu0
      %v536 = vadd.f32 0.0, %v535
      %v537 = vpop.f32.mrb[0].mxu0
      %v538 = vpop.f32.mrb[0].mxu0
      %v539 = vadd.f32 0.0, %v538
      %v540 = vpop.f32.mrb[0].mxu0
      %541 = vmatprep.mubr.bf16.mxu0 0
      %542 = vmatmul.mubr.bf16.gmra.mrb[0].mxu0 %v408
      %v543 = vpop.f32.mrb[0].mxu0
      %v544 = vadd.f32 0.0, %v543
      %v545 = vpop.f32.mrb[0].mxu0
      %v546 = vpop.f32.mrb[0].mxu0
      %v547 = vadd.f32 0.0, %v546
      %v548 = vpop.f32.mrb[0].mxu0
      %549 = vmatprep.mubr.bf16.mxu0 0
      %550 = vmatmul.mubr.bf16.gmra.mrb[0].mxu0 %v409
      %v551 = vpop.f32.mrb[0].mxu0
      %v552 = vadd.f32 0.0, %v551
      %v553 = vpop.f32.mrb[0].mxu0
      %v554 = vpop.f32.mrb[0].mxu0
      %v555 = vadd.f32 0.0, %v554
      %v556 = vpop.f32.mrb[0].mxu0
      %557 = vmatprep.mubr.bf16.mxu0 0
      %558 = vmatmul.mubr.bf16.gmra.mrb[0].mxu0 %v410
      %v559 = vpop.f32.mrb[0].mxu0
      %v560 = vadd.f32 0.0, %v559
      %v561 = vpop.f32.mrb[0].mxu0
      %v562 = vpop.f32.mrb[0].mxu0
      %v563 = vadd.f32 0.0, %v562
      %v564 = vpop.f32.mrb[0].mxu0
      %565 = vmatprep.mubr.bf16.mxu0 0
      %566 = vmatmul.mubr.bf16.gmra.mrb[0].mxu0 %v411
      %v567 = vpop.f32.mrb[0].mxu0
      %v568 = vadd.f32 0.0, %v567
      %v569 = vpop.f32.mrb[0].mxu0
      %v570 = vpop.f32.mrb[0].mxu0
      %v571 = vadd.f32 0.0, %v570
      %v572 = vpop.f32.mrb[0].mxu0
      %573 = vmatprep.mubr.bf16.mxu0 0
      %574 = vmatmul.mubr.bf16.gmra.mrb[0].mxu0 %v412
      %v575 = vpop.f32.mrb[0].mxu0
      %v576 = vadd.f32 0.0, %v575
      %v577 = vpop.f32.mrb[0].mxu0
      %v578 = vpop.f32.mrb[0].mxu0
      %v579 = vadd.f32 0.0, %v578
      %v580 = vpop.f32.mrb[0].mxu0
      %581 = vmatprep.mubr.bf16.mxu0 0
      %582 = vmatmul.mubr.bf16.gmra.mrb[0].mxu0 %v413
      %v583 = vpop.f32.mrb[0].mxu0
      %v584 = vadd.f32 0.0, %v583
      %v585 = vpop.f32.mrb[0].mxu0
      %v586 = vpop.f32.mrb[0].mxu0
      %v587 = vadd.f32 0.0, %v586
      %v588 = vpop.f32.mrb[0].mxu0
      %589 = vmatprep.mubr.bf16.mxu0 0
      %590 = vmatmul.mubr.bf16.gmra.mrb[0].mxu0 %v414
      %v591 = vpop.f32.mrb[0].mxu0
      %v592 = vadd.f32 0.0, %v591
      %v593 = vpop.f32.mrb[0].mxu0
      %v594 = vpop.f32.mrb[0].mxu0
      %v595 = vadd.f32 0.0, %v594
      %v596 = vpop.f32.mrb[0].mxu0
      %597 = vmatprep.mubr.bf16.mxu0 0
      %598 = vmatmul.mubr.bf16.gmra.mrb[0].mxu0 %v415
      %v599 = vpop.f32.mrb[0].mxu0
      %v600 = vadd.f32 0.0, %v599
      %v601 = vpop.f32.mrb[0].mxu0
      %v602 = vpop.f32.mrb[0].mxu0
      %v603 = vadd.f32 0.0, %v602
      %v604 = vpop.f32.mrb[0].mxu0
      %605 = vmatprep.mubr.bf16.mxu0 0
      %606 = vmatmul.mubr.bf16.gmra.mrb[0].mxu0 %v416
      %v607 = vpop.f32.mrb[0].mxu0
      %v608 = vadd.f32 0.0, %v607
      %v609 = vpop.f32.mrb[0].mxu0
      %v610 = vpop.f32.mrb[0].mxu0
      %v611 = vadd.f32 0.0, %v610
      %v612 = vpop.f32.mrb[0].mxu0
      %613 = vmatprep.mubr.bf16.mxu0 0
      %614 = vmatmul.mubr.bf16.gmra.mrb[0].mxu0 %v417
      %v615 = vpop.f32.mrb[0].mxu0
      %v616 = vadd.f32 0.0, %v615
      %v617 = vpop.f32.mrb[0].mxu0
      %v618 = vpop.f32.mrb[0].mxu0
      %v619 = vadd.f32 0.0, %v618
      %v620 = vpop.f32.mrb[0].mxu0
      %621 = vmatprep.mubr.bf16.mxu0 0
      %622 = vmatmul.mubr.bf16.gmra.mrb[0].mxu0 %v418
      %v623 = vpop.f32.mrb[0].mxu0
      %v624 = vadd.f32 0.0, %v623
      %v625 = vpop.f32.mrb[0].mxu0
      %v626 = vpop.f32.mrb[0].mxu0
      %v627 = vadd.f32 0.0, %v626
      %v628 = vpop.f32.mrb[0].mxu0
      %629 = vmatprep.mubr.bf16.mxu0 0
      %630 = vmatmul.mubr.bf16.gmra.mrb[0].mxu0 %v419
      %v631 = vpop.f32.mrb[0].mxu0
      %v632 = vadd.f32 0.0, %v631
      %v633 = vpop.f32.mrb[0].mxu0
      %v634 = vpop.f32.mrb[0].mxu0
      %v635 = vadd.f32 0.0, %v634
      %v636 = vpop.f32.mrb[0].mxu0
      %637 = vmatprep.mubr.bf16.mxu0 0
      %638 = vmatmul.mubr.bf16.gmra.mrb[0].mxu0 %v420
      %v639 = vpop.f32.mrb[0].mxu0
      %v640 = vadd.f32 0.0, %v639
      %v641 = vpop.f32.mrb[0].mxu0
      %v642 = vpop.f32.mrb[0].mxu0
      %v643 = vadd.f32 0.0, %v642
      %v644 = vpop.f32.mrb[0].mxu0
      %645 = vdwg.mxu0
      %v646 = vadd.f32 %v277, %v520
      %v647 = vadd.f32 %v278, %v523
      %v648 = vadd.f32 %v279, %v528
      %v649 = vadd.f32 %v280, %v531
      %v650 = vadd.f32 %v281, %v536
      %v651 = vadd.f32 %v282, %v539
      %v652 = vadd.f32 %v283, %v544
      %v653 = vadd.f32 %v284, %v547
      %v654 = vadd.f32 %v285, %v552
      %v655 = vadd.f32 %v286, %v555
      %v656 = vadd.f32 %v287, %v560
      %v657 = vadd.f32 %v288, %v563
      %v658 = vadd.f32 %v289, %v568
      %v659 = vadd.f32 %v290, %v571
      %v660 = vadd.f32 %v291, %v576
      %v661 = vadd.f32 %v292, %v579
      %v662 = vadd.f32 %v293, %v584
      %v663 = vadd.f32 %v294, %v587
      %v664 = vadd.f32 %v295, %v592
      %v665 = vadd.f32 %v296, %v595
      %v666 = vadd.f32 %v297, %v600
      %v667 = vadd.f32 %v298, %v603
      %v668 = vadd.f32 %v299, %v608
      %v669 = vadd.f32 %v300, %v611
      %v670 = vadd.f32 %v301, %v616
      %v671 = vadd.f32 %v302, %v619
      %v672 = vadd.f32 %v303, %v624
      %v673 = vadd.f32 %v304, %v627
      %v674 = vadd.f32 %v305, %v632
      %v675 = vadd.f32 %v306, %v635
      %v676 = vadd.f32 %v307, %v640
      %v677 = vadd.f32 %v308, %v643
      %678 = vst [vmem:[%s217] sm:$0xff] %v646
      %679 = vst [vmem:[%s217 + $0x8] sm:$0xff] %v647
      %680 = vst [vmem:[%s217 + $0x10] sm:$0xff] %v648
      %681 = vst [vmem:[%s217 + $0x18] sm:$0xff] %v649
      %682 = vst [vmem:[%s217 + $0x20] sm:$0xff] %v650
      %683 = vst [vmem:[%s217 + $0x28] sm:$0xff] %v651
      %684 = vst [vmem:[%s217 + $0x30] sm:$0xff] %v652
      %685 = vst [vmem:[%s217 + $0x38] sm:$0xff] %v653
      %686 = vst [vmem:[%s217 + $0x40] sm:$0xff] %v654
      %687 = vst [vmem:[%s217 + $0x48] sm:$0xff] %v655
      %688 = vst [vmem:[%s217 + $0x50] sm:$0xff] %v656
      %689 = vst [vmem:[%s217 + $0x58] sm:$0xff] %v657
      %690 = vst [vmem:[%s217 + $0x60] sm:$0xff] %v658
      %691 = vst [vmem:[%s217 + $0x68] sm:$0xff] %v659
      %692 = vst [vmem:[%s217 + $0x70] sm:$0xff] %v660
      %693 = vst [vmem:[%s217 + $0x78] sm:$0xff] %v661
      %694 = vst [vmem:[%s217 + $0x80] sm:$0xff] %v662
      %695 = vst [vmem:[%s217 + $0x88] sm:$0xff] %v663
      %696 = vst [vmem:[%s217 + $0x90] sm:$0xff] %v664
      %697 = vst [vmem:[%s217 + $0x98] sm:$0xff] %v665
      %698 = vst [vmem:[%s217 + $0xa0] sm:$0xff] %v666
      %699 = vst [vmem:[%s217 + $0xa8] sm:$0xff] %v667
      %700 = vst [vmem:[%s217 + $0xb0] sm:$0xff] %v668
      %701 = vst [vmem:[%s217 + $0xb8] sm:$0xff] %v669
      %702 = vst [vmem:[%s217 + $0xc0] sm:$0xff] %v670
      %703 = vst [vmem:[%s217 + $0xc8] sm:$0xff] %v671
      %704 = vst [vmem:[%s217 + $0xd0] sm:$0xff] %v672
      %705 = vst [vmem:[%s217 + $0xd8] sm:$0xff] %v673
      %706 = vst [vmem:[%s217 + $0xe0] sm:$0xff] %v674
      %707 = vst [vmem:[%s217 + $0xe8] sm:$0xff] %v675
      %708 = vst [vmem:[%s217 + $0xf0] sm:$0xff] %v676
      %709 = vst [vmem:[%s217 + $0xf8] sm:$0xff] %v677
      // Predicated region
      $region37: #{residual_block_forward.3} parent=31 // pred_check
        %p710 = pneg %p220
      $region38: #{residual_block_forward.3} parent=31 // pred_check_branch
        %712 = sbr.rel (%p710) target = $region40
      $region39: #{residual_block_forward.3} parent=31 // pred_region
        %v713 = vld [vmem:[%s217] sm:$0xff]
        %v714 = vld [vmem:[%s217 + $0x8] sm:$0xff]
        %v715 = vld [vmem:[%s217 + $0x10] sm:$0xff]
        %v716 = vld [vmem:[%s217 + $0x18] sm:$0xff]
        %v717 = vld [vmem:[%s217 + $0x20] sm:$0xff]
        %v718 = vld [vmem:[%s217 + $0x28] sm:$0xff]
        %v719 = vld [vmem:[%s217 + $0x30] sm:$0xff]
        %v720 = vld [vmem:[%s217 + $0x38] sm:$0xff]
        %v721 = vld [vmem:[%s217 + $0x40] sm:$0xff]
        %v722 = vld [vmem:[%s217 + $0x48] sm:$0xff]
        %v723 = vld [vmem:[%s217 + $0x50] sm:$0xff]
        %v724 = vld [vmem:[%s217 + $0x58] sm:$0xff]
        %v725 = vld [vmem:[%s217 + $0x60] sm:$0xff]
        %v726 = vld [vmem:[%s217 + $0x68] sm:$0xff]
        %v727 = vld [vmem:[%s217 + $0x70] sm:$0xff]
        %v728 = vld [vmem:[%s217 + $0x78] sm:$0xff]
        %v729 = vld [vmem:[%s217 + $0x80] sm:$0xff]
        %v730 = vld [vmem:[%s217 + $0x88] sm:$0xff]
        %v731 = vld [vmem:[%s217 + $0x90] sm:$0xff]
        %v732 = vld [vmem:[%s217 + $0x98] sm:$0xff]
        %v733 = vld [vmem:[%s217 + $0xa0] sm:$0xff]
        %v734 = vld [vmem:[%s217 + $0xa8] sm:$0xff]
        %v735 = vld [vmem:[%s217 + $0xb0] sm:$0xff]
        %v736 = vld [vmem:[%s217 + $0xb8] sm:$0xff]
        %v737 = vld [vmem:[%s217 + $0xc0] sm:$0xff]
        %v738 = vld [vmem:[%s217 + $0xc8] sm:$0xff]
        %v739 = vld [vmem:[%s217 + $0xd0] sm:$0xff]
        %v740 = vld [vmem:[%s217 + $0xd8] sm:$0xff]
        %v741 = vld [vmem:[%s217 + $0xe0] sm:$0xff]
        %v742 = vld [vmem:[%s217 + $0xe8] sm:$0xff]
        %v743 = vld [vmem:[%s217 + $0xf0] sm:$0xff]
        %v744 = vld [vmem:[%s217 + $0xf8] sm:$0xff]
        %v745 = vld [vmem:[%s211] sm:$0xf]
        %v746 = vld [vmem:[%s211 + $0x4] sm:$0xf]
        %v747 = vld [vmem:[%s211 + $0x8] sm:$0xf]
        %v748 = vld [vmem:[%s211 + $0xc] sm:$0xf]
        %v749 = vld [vmem:[%s211 + $0x10] sm:$0xf]
        %v750 = vld [vmem:[%s211 + $0x14] sm:$0xf]
        %v751 = vld [vmem:[%s211 + $0x18] sm:$0xf]
        %v752 = vld [vmem:[%s211 + $0x1c] sm:$0xf]
        %v753 = vld [vmem:[%s211 + $0x20] sm:$0xf]
        %v754 = vld [vmem:[%s211 + $0x24] sm:$0xf]
        %v755 = vld [vmem:[%s211 + $0x28] sm:$0xf]
        %v756 = vld [vmem:[%s211 + $0x2c] sm:$0xf]
        %v757 = vld [vmem:[%s211 + $0x30] sm:$0xf]
        %v758 = vld [vmem:[%s211 + $0x34] sm:$0xf]
        %v759 = vld [vmem:[%s211 + $0x38] sm:$0xf]
        %v760 = vld [vmem:[%s211 + $0x3c] sm:$0xf]
        %v761 = vld [vmem:[%s211 + $0x40] sm:$0xf]
        %v762 = vld [vmem:[%s211 + $0x44] sm:$0xf]
        %v763 = vld [vmem:[%s211 + $0x48] sm:$0xf]
        %v764 = vld [vmem:[%s211 + $0x4c] sm:$0xf]
        %v765 = vld [vmem:[%s211 + $0x50] sm:$0xf]
        %v766 = vld [vmem:[%s211 + $0x54] sm:$0xf]
        %v767 = vld [vmem:[%s211 + $0x58] sm:$0xf]
        %v768 = vld [vmem:[%s211 + $0x5c] sm:$0xf]
        %v769 = vld [vmem:[%s211 + $0x60] sm:$0xf]
        %v770 = vld [vmem:[%s211 + $0x64] sm:$0xf]
        %v771 = vld [vmem:[%s211 + $0x68] sm:$0xf]
        %v772 = vld [vmem:[%s211 + $0x6c] sm:$0xf]
        %v773 = vld [vmem:[%s211 + $0x70] sm:$0xf]
        %v774 = vld [vmem:[%s211 + $0x74] sm:$0xf]
        %v775 = vld [vmem:[%s211 + $0x78] sm:$0xf]
        %v776 = vld [vmem:[%s211 + $0x7c] sm:$0xf]
        %v777 = vunpack.c.l.bf16 %v745
        %v778 = vunpack.c.l.bf16 %v746
        %v779 = vunpack.c.l.bf16 %v747
        %v780 = vunpack.c.l.bf16 %v748
        %v781 = vunpack.c.l.bf16 %v749
        %v782 = vunpack.c.l.bf16 %v750
        %v783 = vunpack.c.l.bf16 %v751
        %v784 = vunpack.c.l.bf16 %v752
        %v785 = vunpack.c.l.bf16 %v753
        %v786 = vunpack.c.l.bf16 %v754
        %v787 = vunpack.c.l.bf16 %v755
        %v788 = vunpack.c.l.bf16 %v756
        %v789 = vunpack.c.l.bf16 %v757
        %v790 = vunpack.c.l.bf16 %v758
        %v791 = vunpack.c.l.bf16 %v759
        %v792 = vunpack.c.l.bf16 %v760
        %v793 = vunpack.c.l.bf16 %v761
        %v794 = vunpack.c.l.bf16 %v762
        %v795 = vunpack.c.l.bf16 %v763
        %v796 = vunpack.c.l.bf16 %v764
        %v797 = vunpack.c.l.bf16 %v765
        %v798 = vunpack.c.l.bf16 %v766
        %v799 = vunpack.c.l.bf16 %v767
        %v800 = vunpack.c.l.bf16 %v768
        %v801 = vunpack.c.l.bf16 %v769
        %v802 = vunpack.c.l.bf16 %v770
        %v803 = vunpack.c.l.bf16 %v771
        %v804 = vunpack.c.l.bf16 %v772
        %v805 = vunpack.c.l.bf16 %v773
        %v806 = vunpack.c.l.bf16 %v774
        %v807 = vunpack.c.l.bf16 %v775
        %v808 = vunpack.c.l.bf16 %v776
        %v809 = vadd.f32 %v713, %v777
        %v810 = vadd.f32 %v714, %v778
        %v811 = vadd.f32 %v715, %v779
        %v812 = vadd.f32 %v716, %v780
        %v813 = vadd.f32 %v717, %v781
        %v814 = vadd.f32 %v718, %v782
        %v815 = vadd.f32 %v719, %v783
        %v816 = vadd.f32 %v720, %v784
        %v817 = vadd.f32 %v721, %v785
        %v818 = vadd.f32 %v722, %v786
        %v819 = vadd.f32 %v723, %v787
        %v820 = vadd.f32 %v724, %v788
        %v821 = vadd.f32 %v725, %v789
        %v822 = vadd.f32 %v726, %v790
        %v823 = vadd.f32 %v727, %v791
        %v824 = vadd.f32 %v728, %v792
        %v825 = vadd.f32 %v729, %v793
        %v826 = vadd.f32 %v730, %v794
        %v827 = vadd.f32 %v731, %v795
        %v828 = vadd.f32 %v732, %v796
        %v829 = vadd.f32 %v733, %v797
        %v830 = vadd.f32 %v734, %v798
        %v831 = vadd.f32 %v735, %v799
        %v832 = vadd.f32 %v736, %v800
        %v833 = vadd.f32 %v737, %v801
        %v834 = vadd.f32 %v738, %v802
        %v835 = vadd.f32 %v739, %v803
        %v836 = vadd.f32 %v740, %v804
        %v837 = vadd.f32 %v741, %v805
        %v838 = vadd.f32 %v742, %v806
        %v839 = vadd.f32 %v743, %v807
        %v840 = vadd.f32 %v744, %v808
        %841 = vst [vmem:[%s217] sm:$0xff] %v809
        %842 = vst [vmem:[%s217 + $0x8] sm:$0xff] %v810
        %843 = vst [vmem:[%s217 + $0x10] sm:$0xff] %v811
        %844 = vst [vmem:[%s217 + $0x18] sm:$0xff] %v812
        %845 = vst [vmem:[%s217 + $0x20] sm:$0xff] %v813
        %846 = vst [vmem:[%s217 + $0x28] sm:$0xff] %v814
        %847 = vst [vmem:[%s217 + $0x30] sm:$0xff] %v815
        %848 = vst [vmem:[%s217 + $0x38] sm:$0xff] %v816
        %849 = vst [vmem:[%s217 + $0x40] sm:$0xff] %v817
        %850 = vst [vmem:[%s217 + $0x48] sm:$0xff] %v818
        %851 = vst [vmem:[%s217 + $0x50] sm:$0xff] %v819
        %852 = vst [vmem:[%s217 + $0x58] sm:$0xff] %v820
        %853 = vst [vmem:[%s217 + $0x60] sm:$0xff] %v821
        %854 = vst [vmem:[%s217 + $0x68] sm:$0xff] %v822
        %855 = vst [vmem:[%s217 + $0x70] sm:$0xff] %v823
        %856 = vst [vmem:[%s217 + $0x78] sm:$0xff] %v824
        %857 = vst [vmem:[%s217 + $0x80] sm:$0xff] %v825
        %858 = vst [vmem:[%s217 + $0x88] sm:$0xff] %v826
        %859 = vst [vmem:[%s217 + $0x90] sm:$0xff] %v827
        %860 = vst [vmem:[%s217 + $0x98] sm:$0xff] %v828
        %861 = vst [vmem:[%s217 + $0xa0] sm:$0xff] %v829
        %862 = vst [vmem:[%s217 + $0xa8] sm:$0xff] %v830
        %863 = vst [vmem:[%s217 + $0xb0] sm:$0xff] %v831
        %864 = vst [vmem:[%s217 + $0xb8] sm:$0xff] %v832
        %865 = vst [vmem:[%s217 + $0xc0] sm:$0xff] %v833
        %866 = vst [vmem:[%s217 + $0xc8] sm:$0xff] %v834
        %867 = vst [vmem:[%s217 + $0xd0] sm:$0xff] %v835
        %868 = vst [vmem:[%s217 + $0xd8] sm:$0xff] %v836
        %869 = vst [vmem:[%s217 + $0xe0] sm:$0xff] %v837
        %870 = vst [vmem:[%s217 + $0xe8] sm:$0xff] %v838
        %871 = vst [vmem:[%s217 + $0xf0] sm:$0xff] %v839
        %872 = vst [vmem:[%s217 + $0xf8] sm:$0xff] %v840
      $region40: #{residual_block_forward.3} parent=31 // pred_fallthru
        _
      %s873 = smul.u32 32, %s18
      %p874 = scmp.lt.s32.totalorder %s873, 63
      %s875 = scalar_select %p874, %s873, 63
      %s876 = smul.addr %s875, 8
      %s877 = scalar_lea.vmem %s3, %s876
      // Predicated region
      $region41: #{residual_block_forward.3} parent=31 // pred_check
        %p878 = pneg %p119
      $region42: #{residual_block_forward.3} parent=31 // pred_check_branch
        %880 = sbr.rel (%p878) target = $region44
      $region43: #{residual_block_forward.3} parent=31 // pred_region
        %s881 = smul.u32 32, %s18
      $region44: #{residual_block_forward.3} parent=31 // pred_fallthru
        _
    $region32: #{residual_block_forward.3} parent=5 // pred_fallthru
      _
    %p882 = scmp.le.s32.totalorder 2, %s9
    // Predicated region
    $region45: #{residual_block_forward.3} parent=5 // pred_check
      %p883 = pneg %p882
    $region46: #{residual_block_forward.3} parent=5 // pred_check_branch
      %885 = sbr.rel (%p883) target = $region48
    $region47: #{residual_block_forward.3} parent=5 // pred_region
      %s886 = ssub.s32 %s9, 2
      // Predicated region
      $region49: #{residual_block_forward.3} parent=47 // pred_check
        %p887 = pneg %p125
      $region50: #{residual_block_forward.3} parent=47 // pred_check_branch
        %889 = sbr.rel (%p887) target = $region52
      $region51: #{residual_block_forward.3} parent=47 // pred_region
        %s890 = smul.u32 32, %s20
        %p891 = scmp.lt.s32.totalorder %s890, 63
        %s892 = scalar_select %p891, %s890, 63
        %s893 = smul.addr %s892, 8
        %s894 = scalar_lea.vmem %s3, %s893
      $region52: #{residual_block_forward.3} parent=47 // pred_fallthru
        _
    $region48: #{residual_block_forward.3} parent=5 // pred_fallthru
      _
  $region6: #{residual_block_forward.3} parent=0 // loop_footer
    %s13 = sadd.s32 1, %s9
  $region7: #{residual_block_forward.3} parent=0 // loop_footer_branch
    %8 = sbr.rel target = $region3
  $region8: #{residual_block_forward.3} parent=0 // loop_exit
    _

</llo_original>
